<compile_context>
chip_gen: v5e
topology: v5e:2x2
jax: 0.10.0
libtpu: 0.0.40
codegen_flags: <defaults>
</compile_context>

<pallas_src>
from functools import partial

import numpy as np
import jax
import jax.numpy as jnp
from jax.experimental import pallas as pl
from jax.experimental.pallas import tpu as pltpu

# db4 reconstruction low-pass filter == pywt.Wavelet('db4').filter_bank[2]
DB4_REC_LO = np.array(
    [0.23037781330885523, 0.7148465705525415, 0.6308807679295904,
     -0.02798376941698385, -0.18703481171888114, 0.030841381835986965,
     0.032883011666982945, -0.010597401784997278], dtype=np.float32)

KSIZE = 8
PAD = KSIZE - 2          # = 6, matches padding=(kernel_size-2, kernel_size-2)


# ---------------------------------------------------------------------------
# filter / conv-matrix construction (trace-time numpy, deterministic)
# ---------------------------------------------------------------------------
def get_filters():
    low = DB4_REC_LO.astype(np.float32)
    # get_cmf: high[k] = (-1)^k * low[K-1-k]
    high = (low[::-1] * ((-1.0) ** np.arange(KSIZE))).astype(np.float32)
    return low, high


def conv_matrix(filt, l_pad, stride):
    """M[w, o] = filt[w - stride*o]  (PyTorch cross-correlation). Shape (l_pad, l_out)."""
    k = filt.shape[0]
    l_out = (l_pad - k) // stride + 1
    m = np.zeros((l_pad, l_out), dtype=np.float32)
    for o in range(l_out):
        m[o * stride:o * stride + k, o] = filt
    return m


def _round_up(x, m):
    return ((x + m - 1) // m) * m


def dwt_matrix_stage1(w):
    """(w, 2*w_tot) right-multiply matrix for the horizontal stride-2 DWT.
    Conv zero-padding is folded in (padded X entries are zero -> rows dropped).
    The zero BORDER columns the vertical stage produces (from its own W padding)
    are folded in as all-zero columns, so the final quadrants come out directly
    at width w_tot with exact zero borders (tanh(0)=0 through both stages)."""
    low, high = get_filters()
    lp = w + 2 * PAD
    ml = conv_matrix(low, lp, 2)[PAD:PAD + w, :]      # (w, w_out)
    mh = conv_matrix(high, lp, 2)[PAD:PAD + w, :]
    w_out = ml.shape[1]
    w_tot = w_out + 2 * PAD
    m1 = np.zeros((w, 2 * w_tot), dtype=np.float32)   # columns: [c-block | d-block]
    m1[:, PAD:PAD + w_out] = ml
    m1[:, w_tot + PAD:w_tot + PAD + w_out] = mh
    return m1, w_out, w_tot


def dwt_matrix_stage2(h):
    """(2*h_pad, h) left-multiply matrix for the vertical stride-2 DWT.
    Folds BOTH the conv zero padding and the zero rows the horizontal stage would
    have produced for its padded H range (2*PAD zero rows each side).  The
    high-pass block starts at h_pad = round_up(h_out, 8) (zero filler filter rows)
    so the low/high row split in the kernel is a sublane-aligned slice."""
    low, high = get_filters()
    lp = h + 4 * PAD
    ml = conv_matrix(low, lp, 2)[2 * PAD:2 * PAD + h, :]   # (h, h_out)
    mh = conv_matrix(high, lp, 2)[2 * PAD:2 * PAD + h, :]
    h_out = ml.shape[1]
    h_pad = _round_up(h_out, 8)
    m2t = np.zeros((2 * h_pad, h), dtype=np.float32)
    m2t[:h_out, :] = ml.T
    m2t[h_pad:h_pad + h_out, :] = mh.T
    return m2t, h_out, h_pad


# ---------------------------------------------------------------------------
# fused Pallas kernel: per image (all C channels), both DWT stages + stats
# ---------------------------------------------------------------------------
def _make_fused_kernel(C, h_out, h_pad, w_tot):
    W2 = 2 * w_tot

    def kernel(x_ref, m1_ref, m2t_ref, ll_ref, det_ref, st_ref):
        m1 = m1_ref[...]             # (W, 2*w_tot)
        m2t = m2t_ref[...]           # (2*h_pad, H)

        s_y = jnp.zeros((1, W2), jnp.float32)     # column sums of y   = [sum c | sum d]
        s_y1 = jnp.zeros((1, W2), jnp.float32)    # SmoothL1 col sums of y
        s_lo = jnp.zeros((1, W2), jnp.float32)    # column sums of lo  = [sum ll | sum hl]
        s_hi1 = jnp.zeros((1, W2), jnp.float32)   # SmoothL1 col sums of hi = [lh | hh]

        # TODO(synk): for very large C this unrolled channel loop should become a
        # lax.fori_loop (trace size); C is small for this module.
        for ci in range(C):
            x_c = x_ref[ci]                                              # (H, W)
            # stage 1: horizontal DWT -- Y never leaves VMEM
            y = jnp.tanh(jnp.dot(x_c, m1, preferred_element_type=jnp.float32))
            # stage 2: vertical DWT, low & high filter rows in one matmul
            r = jnp.tanh(jnp.dot(m2t, y, preferred_element_type=jnp.float32))
            lo = r[:h_out, :]                      # low-pass rows:  [ll | hl]
            hi = r[h_pad:h_pad + h_out, :]         # high-pass rows: [lh | hh] (aligned)

            # single full store per quadrant (zero border columns already in place)
            ll_ref[ci] = lo[:, :w_tot]
            det_ref[ci] = hi[:, :w_tot]            # lh
            det_ref[C + ci] = lo[:, w_tot:]        # hl
            det_ref[2 * C + ci] = hi[:, w_tot:]    # hh

            ay = jnp.abs(y)
            ah = jnp.abs(hi)
            s_y = s_y + jnp.sum(y, axis=0, keepdims=True)
            s_y1 = s_y1 + jnp.sum(jnp.where(ay < 1.0, 0.5 * y * y, ay - 0.5),
                                  axis=0, keepdims=True)
            s_lo = s_lo + jnp.sum(lo, axis=0, keepdims=True)
            s_hi1 = s_hi1 + jnp.sum(jnp.where(ah < 1.0, 0.5 * hi * hi, ah - 0.5),
                                    axis=0, keepdims=True)

        st_ref[...] = jnp.concatenate([s_y, s_y1, s_lo, s_hi1], axis=0)  # (4, 2*w_tot)

    return kernel


def fused_dwt(x, m1, m2t, h_out, h_pad, w_tot):
    """One pallas_call: grid over batch images; writes ll, details and fused stats."""
    N, C, H, W = x.shape
    W2 = 2 * w_tot
    kernel = _make_fused_kernel(C, h_out, h_pad, w_tot)

    # Explicit VMEM budget (double-buffered blocks + in-kernel temporaries), so the
    # pipeline stays double-buffered on v7x (64 MiB phys) / v5e (16 MiB scoped default).
    blk_bytes = 4 * (C * H * W                 # x block
                     + 4 * C * h_out * w_tot   # ll + details blocks
                     + 4 * W2                  # stats block
                     + W * W2 + 2 * h_pad * H)  # conv matrices
    tmp_bytes = 4 * C * (H * W2 + 2 * h_pad * W2)   # y, r live values (upper bound)
    vmem_limit = int(min(max(2 * blk_bytes + tmp_bytes + (8 << 20), 32 << 20),
                         110 << 20))
    # TODO(synk): for very large C*H*W (per-image block > VMEM) a channel-split
    # fallback (separate lh/hl/hh outputs + wrapper concat) would be needed.

    cost = pl.CostEstimate(
        flops=2 * N * C * (H * W * W2 + 2 * h_pad * H * W2),
        transcendentals=N * C * (H * W2 + 2 * h_pad * W2),
        bytes_accessed=4 * (N * C * H * W + 4 * N * C * h_out * w_tot
                            + N * 4 * W2 + W * W2 + 2 * h_pad * H))

    ll, det, st = pl.pallas_call(
        kernel,
        out_shape=(jax.ShapeDtypeStruct((N, C, h_out, w_tot), jnp.float32),
                   jax.ShapeDtypeStruct((N, 3 * C, h_out, w_tot), jnp.float32),
                   jax.ShapeDtypeStruct((N, 4, W2), jnp.float32)),
        grid=(N,),
        in_specs=[pl.BlockSpec((None, C, H, W), lambda n: (n, 0, 0, 0)),
                  pl.BlockSpec((W, W2), lambda n: (0, 0)),
                  pl.BlockSpec((2 * h_pad, H), lambda n: (0, 0))],
        out_specs=(pl.BlockSpec((None, C, h_out, w_tot), lambda n: (n, 0, 0, 0)),
                   pl.BlockSpec((None, 3 * C, h_out, w_tot), lambda n: (n, 0, 0, 0)),
                   pl.BlockSpec((None, 4, W2), lambda n: (n, 0, 0))),
        compiler_params=pltpu.CompilerParams(
            dimension_semantics=("parallel",),
            vmem_limit_bytes=vmem_limit),
        cost_estimate=cost,
    )(x, m1, m2t)
    return ll, det, st


# ---------------------------------------------------------------------------
# LevelWNBlocks.forward  (mode='Stable', bottleneck=False)
# ---------------------------------------------------------------------------
@partial(jax.jit, static_argnums=(1, 2))
def level_wn_blocks_forward(x, regu_details=0.1, regu_approx=0.1):
    N, C, H, W = x.shape
    x = x.astype(jnp.float32)

    m1_np, w_out, w_tot = dwt_matrix_stage1(W)
    m2t_np, h_out, h_pad = dwt_matrix_stage2(H)
    m1 = jnp.asarray(m1_np)
    m2t = jnp.asarray(m2t_np)

    ll, details, st = fused_dwt(x, m1, m2t, h_out, h_pad, w_tot)

    # ---- finish the fused regularization statistics (tiny XLA reduce) ----
    st = jnp.sum(st, axis=0)                       # (4, 2*w_tot)
    sum_c = jnp.sum(st[0, :w_tot])
    sum_d = jnp.sum(st[0, w_tot:])
    sl1_d = jnp.sum(st[1, w_tot:])
    sum_ll = jnp.sum(st[2, :w_tot])
    sum_hl = jnp.sum(st[2, w_tot:])
    sl1_lh = jnp.sum(st[3, :w_tot])
    sl1_hh = jnp.sum(st[3, w_tot:])

    # zero rows/cols of the full PyTorch tensors contribute 0 to the sums but do
    # count in the element totals used by the means / SmoothL1Loss (reduction='mean')
    cnt1 = float(N * C * (H + 2 * PAD) * w_out)    # elements of c / d
    cnt2 = float(N * C * h_out * w_tot)            # elements of ll/lh/hl/hh

    mean_c, mean_d = sum_c / cnt1, sum_d / cnt1
    mean_ll, mean_hl = sum_ll / cnt2, sum_hl / cnt2

    r = None
    if regu_approx + regu_details != 0.0:
        rd = jnp.float32(0.0)
        rc = jnp.float32(0.0)
        if regu_details:
            rd = regu_details * (sl1_d / cnt1 + sl1_lh / cnt2 + sl1_hh / cnt2)
        if regu_approx:
            # torch.dist(a, b, p=2) on scalar means == |a - b| (duplicated term kept as in spec)
            rc = regu_approx * (jnp.abs(mean_c - mean_ll)
                                + jnp.abs(mean_ll - mean_c)
                                + jnp.abs(mean_hl - mean_d))
        if regu_approx == 0.0:
            r = rd
        elif regu_details == 0.0:
            r = rc
        else:
            r = rd + rc

    # TODO(synk): bottleneck=True path (BatchNorm2d + ReLU BottleneckBlock) not
    # implemented; the module under test uses bottleneck=False.
    return ll, r, details


# ---------------------------------------------------------------------------
# pure-JAX reference (explicit padding, unfolded) used only for validation
# ---------------------------------------------------------------------------
def _reference_forward(x, regu_details=0.1, regu_approx=0.1):
    low, high = get_filters()
    hp = jax.lax.Precision.HIGHEST
    xp = jnp.pad(x, ((0, 0), (0, 0), (PAD, PAD), (PAD, PAD)))
    ml = jnp.asarray(conv_matrix(low, x.shape[3] + 2 * PAD, 2))
    mh = jnp.asarray(conv_matrix(high, x.shape[3] + 2 * PAD, 2))
    c = jnp.tanh(jnp.einsum('nchw,wo->ncho', xp, ml, precision=hp))
    d = jnp.tanh(jnp.einsum('nchw,wo->ncho', xp, mh, precision=hp))

    def vertical(y):
        hy = y.shape[2]
        yp = jnp.pad(y, ((0, 0), (0, 0), (PAD, PAD), (PAD, PAD)))
        mlv = jnp.asarray(conv_matrix(low, hy + 2 * PAD, 2))
        mhv = jnp.asarray(conv_matrix(high, hy + 2 * PAD, 2))
        lo = jnp.tanh(jnp.einsum('nchw,ho->ncow', yp, mlv, precision=hp))
        hi_ = jnp.tanh(jnp.einsum('nchw,ho->ncow', yp, mhv, precision=hp))
        return lo, hi_

    ll, lh = vertical(c)
    hl, hh = vertical(d)
    details = jnp.concatenate([lh, hl, hh], axis=1)

    def sl1_mean(t):
        a = jnp.abs(t)
        return jnp.mean(jnp.where(a < 1.0, 0.5 * t * t, a - 0.5))

    rd = regu_details * (sl1_mean(d) + sl1_mean(lh) + sl1_mean(hh))
    rc = regu_approx * (jnp.abs(c.mean() - ll.mean())
                        + jnp.abs(ll.mean() - c.mean())
                        + jnp.abs(hl.mean() - d.mean()))
    return ll, rd + rc, details


if __name__ == "__main__":
    key = jax.random.PRNGKey(0)
    x = jax.random.normal(key, (2, 4, 16, 16), dtype=jnp.float32)

    ll, r, details = level_wn_blocks_forward(x, 0.1, 0.1)
    jax.block_until_ready((ll, r, details))

    # shapes implied by the PyTorch module (H=W=16, K=8, pad=6)
    assert ll.shape == (2, 4, 17, 23), ll.shape
    assert details.shape == (2, 12, 17, 23), details.shape
    assert r.shape == (), r.shape

    # numerical check against a pure-JAX mirror of the PyTorch module
    ll_ref, r_ref, det_ref = _reference_forward(x, 0.1, 0.1)
    np.testing.assert_allclose(np.asarray(ll), np.asarray(ll_ref), rtol=1e-4, atol=1e-4)
    np.testing.assert_allclose(np.asarray(details), np.asarray(det_ref), rtol=1e-4, atol=1e-4)
    np.testing.assert_allclose(float(r), float(r_ref), rtol=1e-4, atol=1e-4)

    print("KERNEL_OK")
</pallas_src>

<mosaic_0001>
module attributes {stable_mosaic.version = 11 : i64} {
  func.func @kernel(%arg0: i32, %arg1: memref<1x4x16x16xf32, #tpu.memory_space<vmem>>, %arg2: memref<16x46xf32, #tpu.memory_space<vmem>>, %arg3: memref<48x16xf32, #tpu.memory_space<vmem>>, %arg4: memref<1x4x17x23xf32, #tpu.memory_space<vmem>>, %arg5: memref<1x12x17x23xf32, #tpu.memory_space<vmem>>, %arg6: memref<1x4x46xf32, #tpu.memory_space<vmem>>) attributes {dimension_semantics = [#tpu.dimension_semantics<parallel>], iteration_bounds = array<i64: 2>, scalar_prefetch = 0 : i64, scratch_operands = 0 : i64, tpu.core_type = #tpu.core_type<tc>, window_params = [{transform_indices = @transform_0, window_bounds = array<i64: 1, 4, 16, 16>}, {pipeline_mode = #tpu.pipeline_mode<synchronous>, transform_indices = @transform_1, window_bounds = array<i64: 16, 46>}, {pipeline_mode = #tpu.pipeline_mode<synchronous>, transform_indices = @transform_2, window_bounds = array<i64: 48, 16>}, {transform_indices = @transform_3, window_bounds = array<i64: 1, 4, 17, 23>}, {transform_indices = @transform_4, window_bounds = array<i64: 1, 12, 17, 23>}, {transform_indices = @transform_5, window_bounds = array<i64: 1, 4, 46>}]} {
    %c0 = arith.constant 0 : index
    %c0_0 = arith.constant 0 : index
    %0 = vector.load %arg2[%c0, %c0_0] : memref<16x46xf32, #tpu.memory_space<vmem>>, vector<16x46xf32>
    %c0_1 = arith.constant 0 : index
    %c0_2 = arith.constant 0 : index
    %1 = vector.load %arg3[%c0_1, %c0_2] : memref<48x16xf32, #tpu.memory_space<vmem>>, vector<48x16xf32>
    %cst = arith.constant 0.000000e+00 : f32
    %2 = vector.broadcast %cst : f32 to vector<1x46xf32>
    %cst_3 = arith.constant 0.000000e+00 : f32
    %3 = vector.broadcast %cst_3 : f32 to vector<1x46xf32>
    %cst_4 = arith.constant 0.000000e+00 : f32
    %4 = vector.broadcast %cst_4 : f32 to vector<1x46xf32>
    %cst_5 = arith.constant 0.000000e+00 : f32
    %5 = vector.broadcast %cst_5 : f32 to vector<1x46xf32>
    %c0_6 = arith.constant 0 : index
    %c0_7 = arith.constant 0 : index
    %c0_8 = arith.constant 0 : index
    %c0_9 = arith.constant 0 : index
    %6 = vector.load %arg1[%c0_6, %c0_7, %c0_8, %c0_9] : memref<1x4x16x16xf32, #tpu.memory_space<vmem>>, vector<1x1x16x16xf32>
    %7 = vector.shape_cast %6 : vector<1x1x16x16xf32> to vector<16x16xf32>
    %cst_10 = arith.constant dense<0.000000e+00> : vector<16x46xf32>
    %8 = tpu.matmul %7, %0, %cst_10 {dimension_numbers = #tpu.dot_dimension_numbers<[1], [0], [0], [1], [0, 0, 1, 1], [], []>} : vector<16x16xf32>, vector<16x46xf32>, vector<16x46xf32> -> vector<16x46xf32>
    %9 = math.tanh %8 : vector<16x46xf32>
    %cst_11 = arith.constant dense<0.000000e+00> : vector<48x46xf32>
    %10 = tpu.matmul %1, %9, %cst_11 {dimension_numbers = #tpu.dot_dimension_numbers<[1], [0], [0], [1], [0, 0, 1, 1], [], []>} : vector<48x16xf32>, vector<16x46xf32>, vector<48x46xf32> -> vector<48x46xf32>
    %11 = math.tanh %10 : vector<48x46xf32>
    %12 = vector.extract_strided_slice %11 {offsets = [0, 0], sizes = [17, 46], strides = [1, 1]} : vector<48x46xf32> to vector<17x46xf32>
    %13 = vector.extract_strided_slice %11 {offsets = [24, 0], sizes = [17, 46], strides = [1, 1]} : vector<48x46xf32> to vector<17x46xf32>
    %14 = vector.extract_strided_slice %12 {offsets = [0, 0], sizes = [17, 23], strides = [1, 1]} : vector<17x46xf32> to vector<17x23xf32>
    %c0_12 = arith.constant 0 : index
    %c0_13 = arith.constant 0 : index
    %c0_14 = arith.constant 0 : index
    %c0_15 = arith.constant 0 : index
    %15 = vector.load %arg4[%c0_12, %c0_13, %c0_14, %c0_15] : memref<1x4x17x23xf32, #tpu.memory_space<vmem>>, vector<1x1x17x23xf32>
    %16 = vector.shape_cast %15 : vector<1x1x17x23xf32> to vector<17x23xf32>
    %17 = vector.shape_cast %14 : vector<17x23xf32> to vector<1x1x17x23xf32>
    tpu.vector_store %arg4[%c0_12, %c0_13, %c0_14, %c0_15], %17 {strides = array<i32>} : memref<1x4x17x23xf32, #tpu.memory_space<vmem>>, vector<1x1x17x23xf32>,
    %18 = vector.extract_strided_slice %13 {offsets = [0, 0], sizes = [17, 23], strides = [1, 1]} : vector<17x46xf32> to vector<17x23xf32>
    %c0_16 = arith.constant 0 : index
    %c0_17 = arith.constant 0 : index
    %c0_18 = arith.constant 0 : index
    %c0_19 = arith.constant 0 : index
    %19 = vector.load %arg5[%c0_16, %c0_17, %c0_18, %c0_19] : memref<1x12x17x23xf32, #tpu.memory_space<vmem>>, vector<1x1x17x23xf32>
    %20 = vector.shape_cast %19 : vector<1x1x17x23xf32> to vector<17x23xf32>
    %21 = vector.shape_cast %18 : vector<17x23xf32> to vector<1x1x17x23xf32>
    tpu.vector_store %arg5[%c0_16, %c0_17, %c0_18, %c0_19], %21 {strides = array<i32>} : memref<1x12x17x23xf32, #tpu.memory_space<vmem>>, vector<1x1x17x23xf32>,
    %22 = vector.extract_strided_slice %12 {offsets = [0, 23], sizes = [17, 23], strides = [1, 1]} : vector<17x46xf32> to vector<17x23xf32>
    %c0_20 = arith.constant 0 : index
    %c4 = arith.constant 4 : index
    %c0_21 = arith.constant 0 : index
    %c0_22 = arith.constant 0 : index
    %23 = vector.load %arg5[%c0_20, %c4, %c0_21, %c0_22] : memref<1x12x17x23xf32, #tpu.memory_space<vmem>>, vector<1x1x17x23xf32>
    %24 = vector.shape_cast %23 : vector<1x1x17x23xf32> to vector<17x23xf32>
    %25 = vector.shape_cast %22 : vector<17x23xf32> to vector<1x1x17x23xf32>
    tpu.vector_store %arg5[%c0_20, %c4, %c0_21, %c0_22], %25 {strides = array<i32>} : memref<1x12x17x23xf32, #tpu.memory_space<vmem>>, vector<1x1x17x23xf32>,
    %26 = vector.extract_strided_slice %13 {offsets = [0, 23], sizes = [17, 23], strides = [1, 1]} : vector<17x46xf32> to vector<17x23xf32>
    %c0_23 = arith.constant 0 : index
    %c8 = arith.constant 8 : index
    %c0_24 = arith.constant 0 : index
    %c0_25 = arith.constant 0 : index
    %27 = vector.load %arg5[%c0_23, %c8, %c0_24, %c0_25] : memref<1x12x17x23xf32, #tpu.memory_space<vmem>>, vector<1x1x17x23xf32>
    %28 = vector.shape_cast %27 : vector<1x1x17x23xf32> to vector<17x23xf32>
    %29 = vector.shape_cast %26 : vector<17x23xf32> to vector<1x1x17x23xf32>
    tpu.vector_store %arg5[%c0_23, %c8, %c0_24, %c0_25], %29 {strides = array<i32>} : memref<1x12x17x23xf32, #tpu.memory_space<vmem>>, vector<1x1x17x23xf32>,
    %30 = math.absf %9 : vector<16x46xf32>
    %31 = math.absf %13 : vector<17x46xf32>
    %cst_26 = arith.constant dense<0.000000e+00> : vector<46xf32>
    %32 = vector.multi_reduction <add>, %9, %cst_26 [0] : vector<16x46xf32> to vector<46xf32>
    %33 = vector.shape_cast %32 : vector<46xf32> to vector<1x46xf32>
    %34 = arith.addf %2, %33 : vector<1x46xf32>
    %cst_27 = arith.constant 1.000000e+00 : f32
    %35 = vector.broadcast %cst_27 : f32 to vector<16x46xf32>
    %36 = arith.cmpf olt, %30, %35 : vector<16x46xf32>
    %cst_28 = arith.constant 5.000000e-01 : f32
    %37 = vector.broadcast %cst_28 : f32 to vector<16x46xf32>
    %38 = arith.mulf %37, %9 : vector<16x46xf32>
    %39 = arith.mulf %38, %9 : vector<16x46xf32>
    %cst_29 = arith.constant 5.000000e-01 : f32
    %40 = vector.broadcast %cst_29 : f32 to vector<16x46xf32>
    %41 = arith.subf %30, %40 : vector<16x46xf32>
    %42 = arith.select %36, %39, %41 : vector<16x46xi1>, vector<16x46xf32>
    %cst_30 = arith.constant dense<0.000000e+00> : vector<46xf32>
    %43 = vector.multi_reduction <add>, %42, %cst_30 [0] : vector<16x46xf32> to vector<46xf32>
    %44 = vector.shape_cast %43 : vector<46xf32> to vector<1x46xf32>
    %45 = arith.addf %3, %44 : vector<1x46xf32>
    %cst_31 = arith.constant dense<0.000000e+00> : vector<46xf32>
    %46 = vector.multi_reduction <add>, %12, %cst_31 [0] : vector<17x46xf32> to vector<46xf32>
    %47 = vector.shape_cast %46 : vector<46xf32> to vector<1x46xf32>
    %48 = arith.addf %4, %47 : vector<1x46xf32>
    %cst_32 = arith.constant 1.000000e+00 : f32
    %49 = vector.broadcast %cst_32 : f32 to vector<17x46xf32>
    %50 = arith.cmpf olt, %31, %49 : vector<17x46xf32>
    %cst_33 = arith.constant 5.000000e-01 : f32
    %51 = vector.broadcast %cst_33 : f32 to vector<17x46xf32>
    %52 = arith.mulf %51, %13 : vector<17x46xf32>
    %53 = arith.mulf %52, %13 : vector<17x46xf32>
    %cst_34 = arith.constant 5.000000e-01 : f32
    %54 = vector.broadcast %cst_34 : f32 to vector<17x46xf32>
    %55 = arith.subf %31, %54 : vector<17x46xf32>
    %56 = arith.select %50, %53, %55 : vector<17x46xi1>, vector<17x46xf32>
    %cst_35 = arith.constant dense<0.000000e+00> : vector<46xf32>
    %57 = vector.multi_reduction <add>, %56, %cst_35 [0] : vector<17x46xf32> to vector<46xf32>
    %58 = vector.shape_cast %57 : vector<46xf32> to vector<1x46xf32>
    %59 = arith.addf %5, %58 : vector<1x46xf32>
    %c0_36 = arith.constant 0 : index
    %c1 = arith.constant 1 : index
    %c0_37 = arith.constant 0 : index
    %c0_38 = arith.constant 0 : index
    %60 = vector.load %arg1[%c0_36, %c1, %c0_37, %c0_38] : memref<1x4x16x16xf32, #tpu.memory_space<vmem>>, vector<1x1x16x16xf32>
    %61 = vector.shape_cast %60 : vector<1x1x16x16xf32> to vector<16x16xf32>
    %cst_39 = arith.constant dense<0.000000e+00> : vector<16x46xf32>
    %62 = tpu.matmul %61, %0, %cst_39 {dimension_numbers = #tpu.dot_dimension_numbers<[1], [0], [0], [1], [0, 0, 1, 1], [], []>} : vector<16x16xf32>, vector<16x46xf32>, vector<16x46xf32> -> vector<16x46xf32>
    %63 = math.tanh %62 : vector<16x46xf32>
    %cst_40 = arith.constant dense<0.000000e+00> : vector<48x46xf32>
    %64 = tpu.matmul %1, %63, %cst_40 {dimension_numbers = #tpu.dot_dimension_numbers<[1], [0], [0], [1], [0, 0, 1, 1], [], []>} : vector<48x16xf32>, vector<16x46xf32>, vector<48x46xf32> -> vector<48x46xf32>
    %65 = math.tanh %64 : vector<48x46xf32>
    %66 = vector.extract_strided_slice %65 {offsets = [0, 0], sizes = [17, 46], strides = [1, 1]} : vector<48x46xf32> to vector<17x46xf32>
    %67 = vector.extract_strided_slice %65 {offsets = [24, 0], sizes = [17, 46], strides = [1, 1]} : vector<48x46xf32> to vector<17x46xf32>
    %68 = vector.extract_strided_slice %66 {offsets = [0, 0], sizes = [17, 23], strides = [1, 1]} : vector<17x46xf32> to vector<17x23xf32>
    %c0_41 = arith.constant 0 : index
    %c1_42 = arith.constant 1 : index
    %c0_43 = arith.constant 0 : index
    %c0_44 = arith.constant 0 : index
    %69 = vector.load %arg4[%c0_41, %c1_42, %c0_43, %c0_44] : memref<1x4x17x23xf32, #tpu.memory_space<vmem>>, vector<1x1x17x23xf32>
    %70 = vector.shape_cast %69 : vector<1x1x17x23xf32> to vector<17x23xf32>
    %71 = vector.shape_cast %68 : vector<17x23xf32> to vector<1x1x17x23xf32>
    tpu.vector_store %arg4[%c0_41, %c1_42, %c0_43, %c0_44], %71 {strides = array<i32>} : memref<1x4x17x23xf32, #tpu.memory_space<vmem>>, vector<1x1x17x23xf32>,
    %72 = vector.extract_strided_slice %67 {offsets = [0, 0], sizes = [17, 23], strides = [1, 1]} : vector<17x46xf32> to vector<17x23xf32>
    %c0_45 = arith.constant 0 : index
    %c1_46 = arith.constant 1 : index
    %c0_47 = arith.constant 0 : index
    %c0_48 = arith.constant 0 : index
    %73 = vector.load %arg5[%c0_45, %c1_46, %c0_47, %c0_48] : memref<1x12x17x23xf32, #tpu.memory_space<vmem>>, vector<1x1x17x23xf32>
    %74 = vector.shape_cast %73 : vector<1x1x17x23xf32> to vector<17x23xf32>
    %75 = vector.shape_cast %72 : vector<17x23xf32> to vector<1x1x17x23xf32>
    tpu.vector_store %arg5[%c0_45, %c1_46, %c0_47, %c0_48], %75 {strides = array<i32>} : memref<1x12x17x23xf32, #tpu.memory_space<vmem>>, vector<1x1x17x23xf32>,
    %76 = vector.extract_strided_slice %66 {offsets = [0, 23], sizes = [17, 23], strides = [1, 1]} : vector<17x46xf32> to vector<17x23xf32>
    %c0_49 = arith.constant 0 : index
    %c5 = arith.constant 5 : index
    %c0_50 = arith.constant 0 : index
    %c0_51 = arith.constant 0 : index
    %77 = vector.load %arg5[%c0_49, %c5, %c0_50, %c0_51] : memref<1x12x17x23xf32, #tpu.memory_space<vmem>>, vector<1x1x17x23xf32>
    %78 = vector.shape_cast %77 : vector<1x1x17x23xf32> to vector<17x23xf32>
    %79 = vector.shape_cast %76 : vector<17x23xf32> to vector<1x1x17x23xf32>
    tpu.vector_store %arg5[%c0_49, %c5, %c0_50, %c0_51], %79 {strides = array<i32>} : memref<1x12x17x23xf32, #tpu.memory_space<vmem>>, vector<1x1x17x23xf32>,
    %80 = vector.extract_strided_slice %67 {offsets = [0, 23], sizes = [17, 23], strides = [1, 1]} : vector<17x46xf32> to vector<17x23xf32>
    %c0_52 = arith.constant 0 : index
    %c9 = arith.constant 9 : index
    %c0_53 = arith.constant 0 : index
    %c0_54 = arith.constant 0 : index
    %81 = vector.load %arg5[%c0_52, %c9, %c0_53, %c0_54] : memref<1x12x17x23xf32, #tpu.memory_space<vmem>>, vector<1x1x17x23xf32>
    %82 = vector.shape_cast %81 : vector<1x1x17x23xf32> to vector<17x23xf32>
    %83 = vector.shape_cast %80 : vector<17x23xf32> to vector<1x1x17x23xf32>
    tpu.vector_store %arg5[%c0_52, %c9, %c0_53, %c0_54], %83 {strides = array<i32>} : memref<1x12x17x23xf32, #tpu.memory_space<vmem>>, vector<1x1x17x23xf32>,
    %84 = math.absf %63 : vector<16x46xf32>
    %85 = math.absf %67 : vector<17x46xf32>
    %cst_55 = arith.constant dense<0.000000e+00> : vector<46xf32>
    %86 = vector.multi_reduction <add>, %63, %cst_55 [0] : vector<16x46xf32> to vector<46xf32>
    %87 = vector.shape_cast %86 : vector<46xf32> to vector<1x46xf32>
    %88 = arith.addf %34, %87 : vector<1x46xf32>
    %cst_56 = arith.constant 1.000000e+00 : f32
    %89 = vector.broadcast %cst_56 : f32 to vector<16x46xf32>
    %90 = arith.cmpf olt, %84, %89 : vector<16x46xf32>
    %cst_57 = arith.constant 5.000000e-01 : f32
    %91 = vector.broadcast %cst_57 : f32 to vector<16x46xf32>
    %92 = arith.mulf %91, %63 : vector<16x46xf32>
    %93 = arith.mulf %92, %63 : vector<16x46xf32>
    %cst_58 = arith.constant 5.000000e-01 : f32
    %94 = vector.broadcast %cst_58 : f32 to vector<16x46xf32>
    %95 = arith.subf %84, %94 : vector<16x46xf32>
    %96 = arith.select %90, %93, %95 : vector<16x46xi1>, vector<16x46xf32>
    %cst_59 = arith.constant dense<0.000000e+00> : vector<46xf32>
    %97 = vector.multi_reduction <add>, %96, %cst_59 [0] : vector<16x46xf32> to vector<46xf32>
    %98 = vector.shape_cast %97 : vector<46xf32> to vector<1x46xf32>
    %99 = arith.addf %45, %98 : vector<1x46xf32>
    %cst_60 = arith.constant dense<0.000000e+00> : vector<46xf32>
    %100 = vector.multi_reduction <add>, %66, %cst_60 [0] : vector<17x46xf32> to vector<46xf32>
    %101 = vector.shape_cast %100 : vector<46xf32> to vector<1x46xf32>
    %102 = arith.addf %48, %101 : vector<1x46xf32>
    %cst_61 = arith.constant 1.000000e+00 : f32
    %103 = vector.broadcast %cst_61 : f32 to vector<17x46xf32>
    %104 = arith.cmpf olt, %85, %103 : vector<17x46xf32>
    %cst_62 = arith.constant 5.000000e-01 : f32
    %105 = vector.broadcast %cst_62 : f32 to vector<17x46xf32>
    %106 = arith.mulf %105, %67 : vector<17x46xf32>
    %107 = arith.mulf %106, %67 : vector<17x46xf32>
    %cst_63 = arith.constant 5.000000e-01 : f32
    %108 = vector.broadcast %cst_63 : f32 to vector<17x46xf32>
    %109 = arith.subf %85, %108 : vector<17x46xf32>
    %110 = arith.select %104, %107, %109 : vector<17x46xi1>, vector<17x46xf32>
    %cst_64 = arith.constant dense<0.000000e+00> : vector<46xf32>
    %111 = vector.multi_reduction <add>, %110, %cst_64 [0] : vector<17x46xf32> to vector<46xf32>
    %112 = vector.shape_cast %111 : vector<46xf32> to vector<1x46xf32>
    %113 = arith.addf %59, %112 : vector<1x46xf32>
    %c0_65 = arith.constant 0 : index
    %c2 = arith.constant 2 : index
    %c0_66 = arith.constant 0 : index
    %c0_67 = arith.constant 0 : index
    %114 = vector.load %arg1[%c0_65, %c2, %c0_66, %c0_67] : memref<1x4x16x16xf32, #tpu.memory_space<vmem>>, vector<1x1x16x16xf32>
    %115 = vector.shape_cast %114 : vector<1x1x16x16xf32> to vector<16x16xf32>
    %cst_68 = arith.constant dense<0.000000e+00> : vector<16x46xf32>
    %116 = tpu.matmul %115, %0, %cst_68 {dimension_numbers = #tpu.dot_dimension_numbers<[1], [0], [0], [1], [0, 0, 1, 1], [], []>} : vector<16x16xf32>, vector<16x46xf32>, vector<16x46xf32> -> vector<16x46xf32>
    %117 = math.tanh %116 : vector<16x46xf32>
    %cst_69 = arith.constant dense<0.000000e+00> : vector<48x46xf32>
    %118 = tpu.matmul %1, %117, %cst_69 {dimension_numbers = #tpu.dot_dimension_numbers<[1], [0], [0], [1], [0, 0, 1, 1], [], []>} : vector<48x16xf32>, vector<16x46xf32>, vector<48x46xf32> -> vector<48x46xf32>
    %119 = math.tanh %118 : vector<48x46xf32>
    %120 = vector.extract_strided_slice %119 {offsets = [0, 0], sizes = [17, 46], strides = [1, 1]} : vector<48x46xf32> to vector<17x46xf32>
    %121 = vector.extract_strided_slice %119 {offsets = [24, 0], sizes = [17, 46], strides = [1, 1]} : vector<48x46xf32> to vector<17x46xf32>
    %122 = vector.extract_strided_slice %120 {offsets = [0, 0], sizes = [17, 23], strides = [1, 1]} : vector<17x46xf32> to vector<17x23xf32>
    %c0_70 = arith.constant 0 : index
    %c2_71 = arith.constant 2 : index
    %c0_72 = arith.constant 0 : index
    %c0_73 = arith.constant 0 : index
    %123 = vector.load %arg4[%c0_70, %c2_71, %c0_72, %c0_73] : memref<1x4x17x23xf32, #tpu.memory_space<vmem>>, vector<1x1x17x23xf32>
    %124 = vector.shape_cast %123 : vector<1x1x17x23xf32> to vector<17x23xf32>
    %125 = vector.shape_cast %122 : vector<17x23xf32> to vector<1x1x17x23xf32>
    tpu.vector_store %arg4[%c0_70, %c2_71, %c0_72, %c0_73], %125 {strides = array<i32>} : memref<1x4x17x23xf32, #tpu.memory_space<vmem>>, vector<1x1x17x23xf32>,
    %126 = vector.extract_strided_slice %121 {offsets = [0, 0], sizes = [17, 23], strides = [1, 1]} : vector<17x46xf32> to vector<17x23xf32>
    %c0_74 = arith.constant 0 : index
    %c2_75 = arith.constant 2 : index
    %c0_76 = arith.constant 0 : index
    %c0_77 = arith.constant 0 : index
    %127 = vector.load %arg5[%c0_74, %c2_75, %c0_76, %c0_77] : memref<1x12x17x23xf32, #tpu.memory_space<vmem>>, vector<1x1x17x23xf32>
    %128 = vector.shape_cast %127 : vector<1x1x17x23xf32> to vector<17x23xf32>
    %129 = vector.shape_cast %126 : vector<17x23xf32> to vector<1x1x17x23xf32>
    tpu.vector_store %arg5[%c0_74, %c2_75, %c0_76, %c0_77], %129 {strides = array<i32>} : memref<1x12x17x23xf32, #tpu.memory_space<vmem>>, vector<1x1x17x23xf32>,
    %130 = vector.extract_strided_slice %120 {offsets = [0, 23], sizes = [17, 23], strides = [1, 1]} : vector<17x46xf32> to vector<17x23xf32>
    %c0_78 = arith.constant 0 : index
    %c6 = arith.constant 6 : index
    %c0_79 = arith.constant 0 : index
    %c0_80 = arith.constant 0 : index
    %131 = vector.load %arg5[%c0_78, %c6, %c0_79, %c0_80] : memref<1x12x17x23xf32, #tpu.memory_space<vmem>>, vector<1x1x17x23xf32>
    %132 = vector.shape_cast %131 : vector<1x1x17x23xf32> to vector<17x23xf32>
    %133 = vector.shape_cast %130 : vector<17x23xf32> to vector<1x1x17x23xf32>
    tpu.vector_store %arg5[%c0_78, %c6, %c0_79, %c0_80], %133 {strides = array<i32>} : memref<1x12x17x23xf32, #tpu.memory_space<vmem>>, vector<1x1x17x23xf32>,
    %134 = vector.extract_strided_slice %121 {offsets = [0, 23], sizes = [17, 23], strides = [1, 1]} : vector<17x46xf32> to vector<17x23xf32>
    %c0_81 = arith.constant 0 : index
    %c10 = arith.constant 10 : index
    %c0_82 = arith.constant 0 : index
    %c0_83 = arith.constant 0 : index
    %135 = vector.load %arg5[%c0_81, %c10, %c0_82, %c0_83] : memref<1x12x17x23xf32, #tpu.memory_space<vmem>>, vector<1x1x17x23xf32>
    %136 = vector.shape_cast %135 : vector<1x1x17x23xf32> to vector<17x23xf32>
    %137 = vector.shape_cast %134 : vector<17x23xf32> to vector<1x1x17x23xf32>
    tpu.vector_store %arg5[%c0_81, %c10, %c0_82, %c0_83], %137 {strides = array<i32>} : memref<1x12x17x23xf32, #tpu.memory_space<vmem>>, vector<1x1x17x23xf32>,
    %138 = math.absf %117 : vector<16x46xf32>
    %139 = math.absf %121 : vector<17x46xf32>
    %cst_84 = arith.constant dense<0.000000e+00> : vector<46xf32>
    %140 = vector.multi_reduction <add>, %117, %cst_84 [0] : vector<16x46xf32> to vector<46xf32>
    %141 = vector.shape_cast %140 : vector<46xf32> to vector<1x46xf32>
    %142 = arith.addf %88, %141 : vector<1x46xf32>
    %cst_85 = arith.constant 1.000000e+00 : f32
    %143 = vector.broadcast %cst_85 : f32 to vector<16x46xf32>
    %144 = arith.cmpf olt, %138, %143 : vector<16x46xf32>
    %cst_86 = arith.constant 5.000000e-01 : f32
    %145 = vector.broadcast %cst_86 : f32 to vector<16x46xf32>
    %146 = arith.mulf %145, %117 : vector<16x46xf32>
    %147 = arith.mulf %146, %117 : vector<16x46xf32>
    %cst_87 = arith.constant 5.000000e-01 : f32
    %148 = vector.broadcast %cst_87 : f32 to vector<16x46xf32>
    %149 = arith.subf %138, %148 : vector<16x46xf32>
    %150 = arith.select %144, %147, %149 : vector<16x46xi1>, vector<16x46xf32>
    %cst_88 = arith.constant dense<0.000000e+00> : vector<46xf32>
    %151 = vector.multi_reduction <add>, %150, %cst_88 [0] : vector<16x46xf32> to vector<46xf32>
    %152 = vector.shape_cast %151 : vector<46xf32> to vector<1x46xf32>
    %153 = arith.addf %99, %152 : vector<1x46xf32>
    %cst_89 = arith.constant dense<0.000000e+00> : vector<46xf32>
    %154 = vector.multi_reduction <add>, %120, %cst_89 [0] : vector<17x46xf32> to vector<46xf32>
    %155 = vector.shape_cast %154 : vector<46xf32> to vector<1x46xf32>
    %156 = arith.addf %102, %155 : vector<1x46xf32>
    %cst_90 = arith.constant 1.000000e+00 : f32
    %157 = vector.broadcast %cst_90 : f32 to vector<17x46xf32>
    %158 = arith.cmpf olt, %139, %157 : vector<17x46xf32>
    %cst_91 = arith.constant 5.000000e-01 : f32
    %159 = vector.broadcast %cst_91 : f32 to vector<17x46xf32>
    %160 = arith.mulf %159, %121 : vector<17x46xf32>
    %161 = arith.mulf %160, %121 : vector<17x46xf32>
    %cst_92 = arith.constant 5.000000e-01 : f32
    %162 = vector.broadcast %cst_92 : f32 to vector<17x46xf32>
    %163 = arith.subf %139, %162 : vector<17x46xf32>
    %164 = arith.select %158, %161, %163 : vector<17x46xi1>, vector<17x46xf32>
    %cst_93 = arith.constant dense<0.000000e+00> : vector<46xf32>
    %165 = vector.multi_reduction <add>, %164, %cst_93 [0] : vector<17x46xf32> to vector<46xf32>
    %166 = vector.shape_cast %165 : vector<46xf32> to vector<1x46xf32>
    %167 = arith.addf %113, %166 : vector<1x46xf32>
    %c0_94 = arith.constant 0 : index
    %c3 = arith.constant 3 : index
    %c0_95 = arith.constant 0 : index
    %c0_96 = arith.constant 0 : index
    %168 = vector.load %arg1[%c0_94, %c3, %c0_95, %c0_96] : memref<1x4x16x16xf32, #tpu.memory_space<vmem>>, vector<1x1x16x16xf32>
    %169 = vector.shape_cast %168 : vector<1x1x16x16xf32> to vector<16x16xf32>
    %cst_97 = arith.constant dense<0.000000e+00> : vector<16x46xf32>
    %170 = tpu.matmul %169, %0, %cst_97 {dimension_numbers = #tpu.dot_dimension_numbers<[1], [0], [0], [1], [0, 0, 1, 1], [], []>} : vector<16x16xf32>, vector<16x46xf32>, vector<16x46xf32> -> vector<16x46xf32>
    %171 = math.tanh %170 : vector<16x46xf32>
    %cst_98 = arith.constant dense<0.000000e+00> : vector<48x46xf32>
    %172 = tpu.matmul %1, %171, %cst_98 {dimension_numbers = #tpu.dot_dimension_numbers<[1], [0], [0], [1], [0, 0, 1, 1], [], []>} : vector<48x16xf32>, vector<16x46xf32>, vector<48x46xf32> -> vector<48x46xf32>
    %173 = math.tanh %172 : vector<48x46xf32>
    %174 = vector.extract_strided_slice %173 {offsets = [0, 0], sizes = [17, 46], strides = [1, 1]} : vector<48x46xf32> to vector<17x46xf32>
    %175 = vector.extract_strided_slice %173 {offsets = [24, 0], sizes = [17, 46], strides = [1, 1]} : vector<48x46xf32> to vector<17x46xf32>
    %176 = vector.extract_strided_slice %174 {offsets = [0, 0], sizes = [17, 23], strides = [1, 1]} : vector<17x46xf32> to vector<17x23xf32>
    %c0_99 = arith.constant 0 : index
    %c3_100 = arith.constant 3 : index
    %c0_101 = arith.constant 0 : index
    %c0_102 = arith.constant 0 : index
    %177 = vector.load %arg4[%c0_99, %c3_100, %c0_101, %c0_102] : memref<1x4x17x23xf32, #tpu.memory_space<vmem>>, vector<1x1x17x23xf32>
    %178 = vector.shape_cast %177 : vector<1x1x17x23xf32> to vector<17x23xf32>
    %179 = vector.shape_cast %176 : vector<17x23xf32> to vector<1x1x17x23xf32>
    tpu.vector_store %arg4[%c0_99, %c3_100, %c0_101, %c0_102], %179 {strides = array<i32>} : memref<1x4x17x23xf32, #tpu.memory_space<vmem>>, vector<1x1x17x23xf32>,
    %180 = vector.extract_strided_slice %175 {offsets = [0, 0], sizes = [17, 23], strides = [1, 1]} : vector<17x46xf32> to vector<17x23xf32>
    %c0_103 = arith.constant 0 : index
    %c3_104 = arith.constant 3 : index
    %c0_105 = arith.constant 0 : index
    %c0_106 = arith.constant 0 : index
    %181 = vector.load %arg5[%c0_103, %c3_104, %c0_105, %c0_106] : memref<1x12x17x23xf32, #tpu.memory_space<vmem>>, vector<1x1x17x23xf32>
    %182 = vector.shape_cast %181 : vector<1x1x17x23xf32> to vector<17x23xf32>
    %183 = vector.shape_cast %180 : vector<17x23xf32> to vector<1x1x17x23xf32>
    tpu.vector_store %arg5[%c0_103, %c3_104, %c0_105, %c0_106], %183 {strides = array<i32>} : memref<1x12x17x23xf32, #tpu.memory_space<vmem>>, vector<1x1x17x23xf32>,
    %184 = vector.extract_strided_slice %174 {offsets = [0, 23], sizes = [17, 23], strides = [1, 1]} : vector<17x46xf32> to vector<17x23xf32>
    %c0_107 = arith.constant 0 : index
    %c7 = arith.constant 7 : index
    %c0_108 = arith.constant 0 : index
    %c0_109 = arith.constant 0 : index
    %185 = vector.load %arg5[%c0_107, %c7, %c0_108, %c0_109] : memref<1x12x17x23xf32, #tpu.memory_space<vmem>>, vector<1x1x17x23xf32>
    %186 = vector.shape_cast %185 : vector<1x1x17x23xf32> to vector<17x23xf32>
    %187 = vector.shape_cast %184 : vector<17x23xf32> to vector<1x1x17x23xf32>
    tpu.vector_store %arg5[%c0_107, %c7, %c0_108, %c0_109], %187 {strides = array<i32>} : memref<1x12x17x23xf32, #tpu.memory_space<vmem>>, vector<1x1x17x23xf32>,
    %188 = vector.extract_strided_slice %175 {offsets = [0, 23], sizes = [17, 23], strides = [1, 1]} : vector<17x46xf32> to vector<17x23xf32>
    %c0_110 = arith.constant 0 : index
    %c11 = arith.constant 11 : index
    %c0_111 = arith.constant 0 : index
    %c0_112 = arith.constant 0 : index
    %189 = vector.load %arg5[%c0_110, %c11, %c0_111, %c0_112] : memref<1x12x17x23xf32, #tpu.memory_space<vmem>>, vector<1x1x17x23xf32>
    %190 = vector.shape_cast %189 : vector<1x1x17x23xf32> to vector<17x23xf32>
    %191 = vector.shape_cast %188 : vector<17x23xf32> to vector<1x1x17x23xf32>
    tpu.vector_store %arg5[%c0_110, %c11, %c0_111, %c0_112], %191 {strides = array<i32>} : memref<1x12x17x23xf32, #tpu.memory_space<vmem>>, vector<1x1x17x23xf32>,
    %192 = math.absf %171 : vector<16x46xf32>
    %193 = math.absf %175 : vector<17x46xf32>
    %cst_113 = arith.constant dense<0.000000e+00> : vector<46xf32>
    %194 = vector.multi_reduction <add>, %171, %cst_113 [0] : vector<16x46xf32> to vector<46xf32>
    %195 = vector.shape_cast %194 : vector<46xf32> to vector<1x46xf32>
    %196 = arith.addf %142, %195 : vector<1x46xf32>
    %cst_114 = arith.constant 1.000000e+00 : f32
    %197 = vector.broadcast %cst_114 : f32 to vector<16x46xf32>
    %198 = arith.cmpf olt, %192, %197 : vector<16x46xf32>
    %cst_115 = arith.constant 5.000000e-01 : f32
    %199 = vector.broadcast %cst_115 : f32 to vector<16x46xf32>
    %200 = arith.mulf %199, %171 : vector<16x46xf32>
    %201 = arith.mulf %200, %171 : vector<16x46xf32>
    %cst_116 = arith.constant 5.000000e-01 : f32
    %202 = vector.broadcast %cst_116 : f32 to vector<16x46xf32>
    %203 = arith.subf %192, %202 : vector<16x46xf32>
    %204 = arith.select %198, %201, %203 : vector<16x46xi1>, vector<16x46xf32>
    %cst_117 = arith.constant dense<0.000000e+00> : vector<46xf32>
    %205 = vector.multi_reduction <add>, %204, %cst_117 [0] : vector<16x46xf32> to vector<46xf32>
    %206 = vector.shape_cast %205 : vector<46xf32> to vector<1x46xf32>
    %207 = arith.addf %153, %206 : vector<1x46xf32>
    %cst_118 = arith.constant dense<0.000000e+00> : vector<46xf32>
    %208 = vector.multi_reduction <add>, %174, %cst_118 [0] : vector<17x46xf32> to vector<46xf32>
    %209 = vector.shape_cast %208 : vector<46xf32> to vector<1x46xf32>
    %210 = arith.addf %156, %209 : vector<1x46xf32>
    %cst_119 = arith.constant 1.000000e+00 : f32
    %211 = vector.broadcast %cst_119 : f32 to vector<17x46xf32>
    %212 = arith.cmpf olt, %193, %211 : vector<17x46xf32>
    %cst_120 = arith.constant 5.000000e-01 : f32
    %213 = vector.broadcast %cst_120 : f32 to vector<17x46xf32>
    %214 = arith.mulf %213, %175 : vector<17x46xf32>
    %215 = arith.mulf %214, %175 : vector<17x46xf32>
    %cst_121 = arith.constant 5.000000e-01 : f32
    %216 = vector.broadcast %cst_121 : f32 to vector<17x46xf32>
    %217 = arith.subf %193, %216 : vector<17x46xf32>
    %218 = arith.select %212, %215, %217 : vector<17x46xi1>, vector<17x46xf32>
    %cst_122 = arith.constant dense<0.000000e+00> : vector<46xf32>
    %219 = vector.multi_reduction <add>, %218, %cst_122 [0] : vector<17x46xf32> to vector<46xf32>
    %220 = vector.shape_cast %219 : vector<46xf32> to vector<1x46xf32>
    %221 = arith.addf %167, %220 : vector<1x46xf32>
    %222 = tpu.concatenate %196, %207, %210, %221 in 0 : vector<1x46xf32>, vector<1x46xf32>, vector<1x46xf32>, vector<1x46xf32> -> vector<4x46xf32>
    %c0_123 = arith.constant 0 : index
    %c0_124 = arith.constant 0 : index
    %c0_125 = arith.constant 0 : index
    %223 = vector.load %arg6[%c0_123, %c0_124, %c0_125] : memref<1x4x46xf32, #tpu.memory_space<vmem>>, vector<1x4x46xf32>
    %224 = vector.shape_cast %223 : vector<1x4x46xf32> to vector<4x46xf32>
    %225 = vector.shape_cast %222 : vector<4x46xf32> to vector<1x4x46xf32>
    tpu.vector_store %arg6[%c0_123, %c0_124, %c0_125], %225 {strides = array<i32>} : memref<1x4x46xf32, #tpu.memory_space<vmem>>, vector<1x4x46xf32>,
    return
  }
  func.func @transform_0(%arg0: i32) -> (i32, i32, i32, i32) {
    %c0_i32 = arith.constant 0 : i32
    %c0_i32_0 = arith.constant 0 : i32
    %c0_i32_1 = arith.constant 0 : i32
    %c0_i32_2 = arith.constant 0 : i32
    return %arg0, %c0_i32, %c0_i32_0, %c0_i32_1 : i32, i32, i32, i32
  }
  func.func @transform_1(%arg0: i32) -> (i32, i32) {
    %c0_i32 = arith.constant 0 : i32
    %c0_i32_0 = arith.constant 0 : i32
    %c0_i32_1 = arith.constant 0 : i32
    return %c0_i32, %c0_i32_0 : i32, i32
  }
  func.func @transform_2(%arg0: i32) -> (i32, i32) {
    %c0_i32 = arith.constant 0 : i32
    %c0_i32_0 = arith.constant 0 : i32
    %c0_i32_1 = arith.constant 0 : i32
    return %c0_i32, %c0_i32_0 : i32, i32
  }
  func.func @transform_3(%arg0: i32) -> (i32, i32, i32, i32) {
    %c0_i32 = arith.constant 0 : i32
    %c0_i32_0 = arith.constant 0 : i32
    %c0_i32_1 = arith.constant 0 : i32
    %c0_i32_2 = arith.constant 0 : i32
    return %arg0, %c0_i32, %c0_i32_0, %c0_i32_1 : i32, i32, i32, i32
  }
  func.func @transform_4(%arg0: i32) -> (i32, i32, i32, i32) {
    %c0_i32 = arith.constant 0 : i32
    %c0_i32_0 = arith.constant 0 : i32
    %c0_i32_1 = arith.constant 0 : i32
    %c0_i32_2 = arith.constant 0 : i32
    return %arg0, %c0_i32, %c0_i32_0, %c0_i32_1 : i32, i32, i32, i32
  }
  func.func @transform_5(%arg0: i32) -> (i32, i32, i32) {
    %c0_i32 = arith.constant 0 : i32
    %c0_i32_0 = arith.constant 0 : i32
    %c0_i32_1 = arith.constant 0 : i32
    return %arg0, %c0_i32, %c0_i32_0 : i32, i32, i32
  }
}

</mosaic_0001>

<llo_original>
// kernel: level_wn_blocks_forward.1
$region0: #{level_wn_blocks_forward.1}
  #allocation0 [shape = 'u32[]', space=smem, size = 0x4, offset = 0x4, fixed_abs, tag = 'smem constant byte address 0x4 - core index']
  #allocation1 [shape = 'u32[72,128]{1,0:T(1,128)}', space=vmem, size = 0x9000, scoped, tag = 'internal scratch']
  %s0 = inlined_call_operand.hbm [shape: f32[2,4,16,16], index: 0, kind: input, shape index: {}]
  %s1 = inlined_call_operand.hbm [shape: f32[16,46], index: 1, kind: input, shape index: {}]
  %s2 = inlined_call_operand.hbm [shape: f32[48,16], index: 2, kind: input, shape index: {}]
  %s3 = inlined_call_operand.vmem [shape: f32[2,4,17,23], index: 3, kind: output, shape index: {0}]
  %s4 = inlined_call_operand.vmem [shape: f32[2,12,17,23], index: 4, kind: output, shape index: {1}]
  %s5 = inlined_call_operand.vmem [shape: f32[2,4,46], index: 5, kind: output, shape index: {2}]
  %6 = xla_tuple %s3, %s4, %s5
  %s7 = sld [smem:[#allocation0]]
  $region73: #{level_wn_blocks_forward.1} parent=0
    _
  %s9 = ssub.s32 1, %s7
  %s10 = scalar_select 0, %s9, %s7
  $region1: #{level_wn_blocks_forward.1} parent=0
    #allocation2 [shape = 'u8[65536]{0}', space=vmem, size = 0x10000, scoped, tag = 'input window, operand 0']
    #allocation3 [shape = 's32[2]{0}', space=sflag, size = 0x8, scoped, tag = 'scoped memory for level_wn_blocks_forward.1']
    #allocation4 [shape = 'u8[8192]{0}', space=vmem, size = 0x2000, scoped, tag = 'input window, operand 1, single buffered']
    #allocation5 [shape = 's32[1]{0}', space=sflag, size = 0x4, scoped, tag = 'scoped memory for level_wn_blocks_forward.1']
    #allocation6 [shape = 'u8[24576]{0}', space=vmem, size = 0x6000, scoped, tag = 'input window, operand 2, single buffered']
    %11 = vsyncpa [#allocation3], 0
    %s12 = scalar_lea.sflag [#allocation3], 1
    %13 = vsyncpa %s12, 0
    %14 = vsyncpa [#allocation5], 0
    loop: start=0, step=1, limit=4
    $region2: #{level_wn_blocks_forward.1} parent=1 // loop_pre_header
      _
    $region3: #{level_wn_blocks_forward.1} parent=1 // loop_header
      %s16 = sphi 0, %s20
      %p17 = scmp.ge.s32.totalorder %s16, 4
      %s26 = sphi 0, %s28
      %s29 = sphi 0, %s26
      %s30 = sphi 0, %s29
      %s46 = sphi 0, %s30
      %s50 = sphi 0, %s50
      %s52 = sphi 0, %s50
      %s53 = sphi 0, %s52
      %s67 = sphi 0, %s53
      %s71 = sphi 0, %s71
      %s73 = sphi 0, %s71
      %s74 = sphi 0, %s73
      %s88 = sphi 0, %s74
      %s94 = sphi 0, %s96
      %s97 = sphi 0, %s94
      %s98 = sphi 0, %s97
      %s114 = sphi 0, %s98
      %s120 = sphi 0, %s122
      %s123 = sphi 0, %s120
      %s124 = sphi 0, %s123
      %s140 = sphi 0, %s124
      %s146 = sphi 0, %s148
      %s149 = sphi 0, %s146
      %s150 = sphi 0, %s149
      %s166 = sphi 0, %s150
    $region4: #{level_wn_blocks_forward.1} parent=1 // loop_header_branch
      %19 = sbr.rel (%p17) target = $region8
    $region5: #{level_wn_blocks_forward.1} parent=1 // loop_body
      %s21 = ssub.s32 %s16, 1
      %s22 = ssub.s32 %s16, 2
      %s23 = sadd.s32 %s16, 1
      %s24 = ssub.s32 %s16, %s23
      %p25 = scmp.eq.s32.totalorder %s24, 0
      %s27 = sadd.s32 %s26, 1
      %s28 = scalar_select %p25, %s26, %s27
      %p31 = pneg %p25
      %p32 = scmp.eq.s32.totalorder %s16, 1
      %p33 = por %p31, %p32
      %p34 = scmp.ne.s32.totalorder %s26, %s29
      %p35 = scmp.eq.s32.totalorder %s16, 0
      %p36 = por %p34, %p35
      %p37 = scmp.ne.s32.totalorder %s26, %s29
      %p38 = scmp.eq.s32.totalorder %s21, 1
      %p39 = por %p37, %p38
      %p40 = scmp.ne.s32.totalorder %s29, %s30
      %p41 = scmp.eq.s32.totalorder %s21, 0
      %p42 = por %p40, %p41
      %p43 = scmp.ne.s32.totalorder %s29, %s30
      %p44 = scmp.eq.s32.totalorder %s22, 1
      %p45 = por %p43, %p44
      %p47 = scmp.ne.s32.totalorder %s30, %s46
      %p48 = scmp.eq.s32.totalorder %s22, 0
      %p49 = por %p47, %p48
      %s51 = sadd.s32 %s50, 1
      %p54 = scmp.eq.s32.totalorder %s16, 1
      %p55 = scmp.ne.s32.totalorder %s50, %s52
      %p56 = scmp.eq.s32.totalorder %s16, 0
      %p57 = por %p55, %p56
      %p58 = scmp.ne.s32.totalorder %s50, %s52
      %p59 = scmp.eq.s32.totalorder %s21, 1
      %p60 = por %p58, %p59
      %p61 = scmp.ne.s32.totalorder %s52, %s53
      %p62 = scmp.eq.s32.totalorder %s21, 0
      %p63 = por %p61, %p62
      %p64 = scmp.ne.s32.totalorder %s52, %s53
      %p65 = scmp.eq.s32.totalorder %s22, 1
      %p66 = por %p64, %p65
      %p68 = scmp.ne.s32.totalorder %s53, %s67
      %p69 = scmp.eq.s32.totalorder %s22, 0
      %p70 = por %p68, %p69
      %s72 = sadd.s32 %s71, 1
      %p75 = scmp.eq.s32.totalorder %s16, 1
      %p76 = scmp.ne.s32.totalorder %s71, %s73
      %p77 = scmp.eq.s32.totalorder %s16, 0
      %p78 = por %p76, %p77
      %p79 = scmp.ne.s32.totalorder %s71, %s73
      %p80 = scmp.eq.s32.totalorder %s21, 1
      %p81 = por %p79, %p80
      %p82 = scmp.ne.s32.totalorder %s73, %s74
      %p83 = scmp.eq.s32.totalorder %s21, 0
      %p84 = por %p82, %p83
      %p85 = scmp.ne.s32.totalorder %s73, %s74
      %p86 = scmp.eq.s32.totalorder %s22, 1
      %p87 = por %p85, %p86
      %p89 = scmp.ne.s32.totalorder %s74, %s88
      %p90 = scmp.eq.s32.totalorder %s22, 0
      %p91 = por %p89, %p90
      %s92 = ssub.s32 %s16, %s23
      %p93 = scmp.eq.s32.totalorder %s92, 0
      %s95 = sadd.s32 %s94, 1
      %s96 = scalar_select %p93, %s94, %s95
      %p99 = pneg %p93
      %p100 = scmp.eq.s32.totalorder %s16, 1
      %p101 = por %p99, %p100
      %p102 = scmp.ne.s32.totalorder %s94, %s97
      %p103 = scmp.eq.s32.totalorder %s16, 0
      %p104 = por %p102, %p103
      %p105 = scmp.ne.s32.totalorder %s94, %s97
      %p106 = scmp.eq.s32.totalorder %s21, 1
      %p107 = por %p105, %p106
      %p108 = scmp.ne.s32.totalorder %s97, %s98
      %p109 = scmp.eq.s32.totalorder %s21, 0
      %p110 = por %p108, %p109
      %p111 = scmp.ne.s32.totalorder %s97, %s98
      %p112 = scmp.eq.s32.totalorder %s22, 1
      %p113 = por %p111, %p112
      %p115 = scmp.ne.s32.totalorder %s98, %s114
      %p116 = scmp.eq.s32.totalorder %s22, 0
      %p117 = por %p115, %p116
      %s118 = ssub.s32 %s16, %s23
      %p119 = scmp.eq.s32.totalorder %s118, 0
      %s121 = sadd.s32 %s120, 1
      %s122 = scalar_select %p119, %s120, %s121
      %p125 = pneg %p119
      %p126 = scmp.eq.s32.totalorder %s16, 1
      %p127 = por %p125, %p126
      %p128 = scmp.ne.s32.totalorder %s120, %s123
      %p129 = scmp.eq.s32.totalorder %s16, 0
      %p130 = por %p128, %p129
      %p131 = scmp.ne.s32.totalorder %s120, %s123
      %p132 = scmp.eq.s32.totalorder %s21, 1
      %p133 = por %p131, %p132
      %p134 = scmp.ne.s32.totalorder %s123, %s124
      %p135 = scmp.eq.s32.totalorder %s21, 0
      %p136 = por %p134, %p135
      %p137 = scmp.ne.s32.totalorder %s123, %s124
      %p138 = scmp.eq.s32.totalorder %s22, 1
      %p139 = por %p137, %p138
      %p141 = scmp.ne.s32.totalorder %s124, %s140
      %p142 = scmp.eq.s32.totalorder %s22, 0
      %p143 = por %p141, %p142
      %s144 = ssub.s32 %s16, %s23
      %p145 = scmp.eq.s32.totalorder %s144, 0
      %s147 = sadd.s32 %s146, 1
      %s148 = scalar_select %p145, %s146, %s147
      %p151 = pneg %p145
      %p152 = scmp.eq.s32.totalorder %s16, 1
      %p153 = por %p151, %p152
      %p154 = scmp.ne.s32.totalorder %s146, %s149
      %p155 = scmp.eq.s32.totalorder %s16, 0
      %p156 = por %p154, %p155
      %p157 = scmp.ne.s32.totalorder %s146, %s149
      %p158 = scmp.eq.s32.totalorder %s21, 1
      %p159 = por %p157, %p158
      %p160 = scmp.ne.s32.totalorder %s149, %s150
      %p161 = scmp.eq.s32.totalorder %s21, 0
      %p162 = por %p160, %p161
      %p163 = scmp.ne.s32.totalorder %s149, %s150
      %p164 = scmp.eq.s32.totalorder %s22, 1
      %p165 = por %p163, %p164
      %p167 = scmp.ne.s32.totalorder %s150, %s166
      %p168 = scmp.eq.s32.totalorder %s22, 0
      %p169 = por %p167, %p168
      %p170 = scmp.le.s32.totalorder 1, %s16
      %p171 = scmp.lt.s32.totalorder %s16, 3
      %p172 = pnand %p170, %p171
      %p173 = pneg %p172
      // Predicated region
      $region9: #{level_wn_blocks_forward.1} parent=5 // pred_check
        _
      $region10: #{level_wn_blocks_forward.1} parent=5 // pred_check_branch
        %175 = sbr.rel (%p172) target = $region12
      $region11: #{level_wn_blocks_forward.1} parent=5 // pred_region
        %s176 = ssub.s32 %s16, 1
        // Predicated region
        $region13: #{level_wn_blocks_forward.1} parent=11 // pred_check
          %p177 = pneg %p63
        $region14: #{level_wn_blocks_forward.1} parent=11 // pred_check_branch
          %179 = sbr.rel (%p177) target = $region16
        $region15: #{level_wn_blocks_forward.1} parent=11 // pred_region
          %181 = vsyncadd [#allocation5], 0
          %s182 = sshll.u32 %s1, 4
          %s183 = int_to_ptr.hbm [resolvable:$true] %s182
          %s184 = sshll.u32 [#allocation4], 4
          %s185 = int_to_ptr.vmem [resolvable:$true] %s184
          %190 = dma.hbm_to_vmem [thread:$0]  %s183, 256, %s185, [#allocation5], 128, 128, 8
        $region16: #{level_wn_blocks_forward.1} parent=11 // pred_fallthru
          _
        // Predicated region
        $region17: #{level_wn_blocks_forward.1} parent=11 // pred_check
          %p191 = pneg %p84
        $region18: #{level_wn_blocks_forward.1} parent=11 // pred_check_branch
          %193 = sbr.rel (%p191) target = $region20
        $region19: #{level_wn_blocks_forward.1} parent=11 // pred_region
          %195 = vsyncadd [#allocation5], 0
          %s196 = sshll.u32 %s2, 4
          %s197 = int_to_ptr.hbm [resolvable:$true] %s196
          %s198 = sshll.u32 [#allocation6], 4
          %s199 = int_to_ptr.vmem [resolvable:$true] %s198
          %204 = dma.hbm_to_vmem [thread:$0]  %s197, 768, %s199, [#allocation5], 128, 128, 8
        $region20: #{level_wn_blocks_forward.1} parent=11 // pred_fallthru
          _
      $region12: #{level_wn_blocks_forward.1} parent=5 // pred_fallthru
        _
      %p205 = scmp.lt.s32.totalorder %s16, 2
      // Predicated region
      $region21: #{level_wn_blocks_forward.1} parent=5 // pred_check
        %p206 = pneg %p205
      $region22: #{level_wn_blocks_forward.1} parent=5 // pred_check_branch
        %208 = sbr.rel (%p206) target = $region24
      $region23: #{level_wn_blocks_forward.1} parent=5 // pred_region
        // Predicated region
        $region25: #{level_wn_blocks_forward.1} parent=23 // pred_check
          %p209 = pneg %p36
        $region26: #{level_wn_blocks_forward.1} parent=23 // pred_check_branch
          %211 = sbr.rel (%p209) target = $region28
        $region27: #{level_wn_blocks_forward.1} parent=23 // pred_region
          %s212 = sand.u32 %s26, 1
          %s213 = scalar_lea.sflag [#allocation3], %s212
          %s214 = sand.u32 %s26, 1
          %s215 = smul.addr %s214, 64
          %s216 = scalar_lea.vmem [#allocation2], %s215
          %218 = vsyncadd %s213, 0
          %s219 = smul.addr %s16, 8
          %s220 = smul.addr %s219, 8
          %s221 = scalar_lea.hbm %s0, %s220
          %s222 = sshll.u32 %s221, 4
          %s223 = int_to_ptr.hbm [resolvable:$true] %s222
          %s224 = sshll.u32 %s216, 4
          %s225 = int_to_ptr.vmem [resolvable:$true] %s224
          %230 = dma.hbm_to_vmem [thread:$0]  %s223, 1024, %s225, %s213, 128, 128, 8
        $region28: #{level_wn_blocks_forward.1} parent=23 // pred_fallthru
          _
      $region24: #{level_wn_blocks_forward.1} parent=5 // pred_fallthru
        _
      %p231 = scmp.le.s32.totalorder 1, %s16
      %p232 = scmp.lt.s32.totalorder %s16, 3
      %p233 = pnand %p231, %p232
      %p234 = pneg %p233
      // Predicated region
      $region29: #{level_wn_blocks_forward.1} parent=5 // pred_check
        _
      $region30: #{level_wn_blocks_forward.1} parent=5 // pred_check_branch
        %236 = sbr.rel (%p233) target = $region32
      $region31: #{level_wn_blocks_forward.1} parent=5 // pred_region
        %s237 = ssub.s32 %s16, 1
        %s238 = sand.u32 %s29, 1
        %s239 = scalar_lea.sflag [#allocation3], %s238
        %s240 = sand.u32 %s29, 1
        %s241 = smul.addr %s240, 64
        %s242 = scalar_lea.vmem [#allocation2], %s241
        // Predicated region
        $region33: #{level_wn_blocks_forward.1} parent=31 // pred_check
          %p243 = pneg %p42
        $region34: #{level_wn_blocks_forward.1} parent=31 // pred_check_branch
          %245 = sbr.rel (%p243) target = $region36
        $region35: #{level_wn_blocks_forward.1} parent=31 // pred_region
          %247 = dma.done %s239, 1024
        $region36: #{level_wn_blocks_forward.1} parent=31 // pred_fallthru
          _
        // Predicated region
        $region37: #{level_wn_blocks_forward.1} parent=31 // pred_check
          %p248 = pneg %p63
        $region38: #{level_wn_blocks_forward.1} parent=31 // pred_check_branch
          %250 = sbr.rel (%p248) target = $region40
        $region39: #{level_wn_blocks_forward.1} parent=31 // pred_region
          %252 = dma.done [#allocation5], 256
        $region40: #{level_wn_blocks_forward.1} parent=31 // pred_fallthru
          _
        // Predicated region
        $region41: #{level_wn_blocks_forward.1} parent=31 // pred_check
          %p253 = pneg %p84
        $region42: #{level_wn_blocks_forward.1} parent=31 // pred_check_branch
          %255 = sbr.rel (%p253) target = $region44
        $region43: #{level_wn_blocks_forward.1} parent=31 // pred_region
          %257 = dma.done [#allocation5], 768
        $region44: #{level_wn_blocks_forward.1} parent=31 // pred_fallthru
          _
        %s258 = sand.u32 %s29, 1
        %s259 = scalar_lea.sflag [#allocation3], %s258
        %s260 = sand.u32 %s29, 1
        %s261 = smul.addr %s260, 64
        %s262 = scalar_lea.vmem [#allocation2], %s261
        %p263 = pneg %p42
        %p264 = pneg %p39
        %p265 = pneg %p63
        %p266 = pneg %p60
        %p267 = pneg %p84
        %p268 = pneg %p81
        %p269 = pneg %p110
        %p270 = pneg %p107
        %p271 = scmp.lt.s32.totalorder %s21, 1
        %s272 = scalar_select %p271, %s21, 1
        %s273 = smul.addr %s272, 12
        %s274 = smul.addr %s273, 8
        %s275 = scalar_lea.vmem %s3, %s274
        %p276 = pneg %p136
        %p277 = pneg %p133
        %p278 = scmp.lt.s32.totalorder %s21, 1
        %s279 = scalar_select %p278, %s21, 1
        %s280 = smul.addr %s279, 36
        %s281 = smul.addr %s280, 8
        %s282 = scalar_lea.vmem %s4, %s281
        %p283 = pneg %p162
        %p284 = pneg %p159
        %p285 = scmp.lt.s32.totalorder %s21, 1
        %s286 = scalar_select %p285, %s21, 1
        %s287 = smul.addr %s286, 4
        %s288 = scalar_lea.vmem %s5, %s287
        %p289 = scmp.lt.s32.totalorder %s21, 1
        %s290 = scalar_select %p289, %s21, 1
        %s291 = smul.addr %s290, 12
        %s292 = smul.addr %s291, 8
        %s293 = scalar_lea.vmem %s3, %s292
        %p294 = scmp.lt.s32.totalorder %s21, 1
        %s295 = scalar_select %p294, %s21, 1
        %s296 = smul.addr %s295, 36
        %s297 = smul.addr %s296, 8
        %s298 = scalar_lea.vmem %s4, %s297
        %p299 = scmp.lt.s32.totalorder %s21, 1
        %s300 = scalar_select %p299, %s21, 1
        %s301 = smul.addr %s300, 4
        %s302 = scalar_lea.vmem %s5, %s301
        %v303 = vld [vmem:[#allocation4] sm:$0xff]
        %v304 = vld [vmem:[#allocation4 + $0x8] sm:$0xff]
        %v305 = vld [vmem:[#allocation6] sm:$0xff]
        %v306 = vld [vmem:[#allocation6 + $0x8] sm:$0xff]
        %v307 = vld [vmem:[#allocation6 + $0x10] sm:$0xff]
        %v308 = vld [vmem:[#allocation6 + $0x18] sm:$0xff]
        %v309 = vld [vmem:[#allocation6 + $0x20] sm:$0xff]
        %v310 = vld [vmem:[#allocation6 + $0x28] sm:$0xff]
        %v311 = vld [vmem:[%s242] sm:$0xff]
        %v312 = vld [vmem:[%s242 + $0x8] sm:$0xff]
        %vm313 = vcmask 130048
        %v315 = vsel %vm313, %v311, 0
        %v318 = vsel %vm313, %v312, 0
        %320 = vmatpush.msra.mxu0 0.0
        %321 = vmatpush.msra.mxu0 0.0
        %322 = vmatpush.msra.mxu0 0.0
        %323 = vmatpush.msra.mxu0 0.0
        %324 = vmatpush.msra.mxu0 0.0
        %325 = vmatpush.msra.mxu0 0.0
        %326 = vmatpush.msra.mxu0 0.0
        %327 = vmatpush.msra.mxu0 0.0
        %328 = vmatpush.msra.mxu0 0.0
        %329 = vmatpush.msra.mxu0 0.0
        %330 = vmatpush.msra.mxu0 0.0
        %331 = vmatpush.msra.mxu0 0.0
        %332 = vmatpush.msra.mxu0 0.0
        %333 = vmatpush.msra.mxu0 0.0
        %334 = vmatpush.msra.mxu0 %v304
        %335 = vmatpush.msra.mxu0 %v303
        %336 = vmatmul.f32.gmra.mxu0 %v315
        %v337 = vpop.f32.mrf.mxu0
        %v338 = vadd.f32 0.0, %v337
        %339 = vmatmul.f32.gmra.mxu0 %v318
        %v340 = vpop.f32.mrf.mxu0
        %v341 = vadd.f32 0.0, %v340
        %342 = vdwg.mxu0
        %v343 = vtanh.pop %v338
        %v344 = vtanh.pop %v341
        %v346 = vsel %vm313, %v305, 0
        %v349 = vsel %vm313, %v306, 0
        %v352 = vsel %vm313, %v307, 0
        %v355 = vsel %vm313, %v308, 0
        %v358 = vsel %vm313, %v309, 0
        %v361 = vsel %vm313, %v310, 0
        %363 = vmatpush.msra.mxu0 0.0
        %364 = vmatpush.msra.mxu0 0.0
        %365 = vmatpush.msra.mxu0 0.0
        %366 = vmatpush.msra.mxu0 0.0
        %367 = vmatpush.msra.mxu0 0.0
        %368 = vmatpush.msra.mxu0 0.0
        %369 = vmatpush.msra.mxu0 0.0
        %370 = vmatpush.msra.mxu0 0.0
        %371 = vmatpush.msra.mxu0 0.0
        %372 = vmatpush.msra.mxu0 0.0
        %373 = vmatpush.msra.mxu0 0.0
        %374 = vmatpush.msra.mxu0 0.0
        %375 = vmatpush.msra.mxu0 0.0
        %376 = vmatpush.msra.mxu0 0.0
        %377 = vmatpush.msra.mxu0 %v344
        %378 = vmatpush.msra.mxu0 %v343
        %379 = vmatmul.f32.gmra.mxu0 %v346
        %v380 = vpop.f32.mrf.mxu0
        %v381 = vadd.f32 0.0, %v380
        %382 = vmatmul.f32.gmra.mxu0 %v349
        %v383 = vpop.f32.mrf.mxu0
        %v384 = vadd.f32 0.0, %v383
        %385 = vmatmul.f32.gmra.mxu0 %v352
        %v386 = vpop.f32.mrf.mxu0
        %v387 = vadd.f32 0.0, %v386
        %388 = vmatmul.f32.gmra.mxu0 %v355
        %v389 = vpop.f32.mrf.mxu0
        %v390 = vadd.f32 0.0, %v389
        %391 = vmatmul.f32.gmra.mxu0 %v358
        %v392 = vpop.f32.mrf.mxu0
        %v393 = vadd.f32 0.0, %v392
        %394 = vmatmul.f32.gmra.mxu0 %v361
        %v395 = vpop.f32.mrf.mxu0
        %v396 = vadd.f32 0.0, %v395
        %397 = vdwg.mxu0
        %v398 = vtanh.pop %v381
        %v399 = vtanh.pop %v384
        %v400 = vtanh.pop %v387
        %v401 = vtanh.pop %v390
        %v402 = vtanh.pop %v393
        %v403 = vtanh.pop %v396
        %vm404 = vcmask 187392
        %405 = vst.msk [vmem:[%s293] sm:$0xff] %vm404, %v398
        %406 = vst.msk [vmem:[%s293 + $0x8] sm:$0xff] %vm404, %v399
        %vm407 = vcmask 180224
        %408 = vst.msk [vmem:[%s293 + $0x10] sm:$0x1] %vm407, %v400
        %409 = vst.msk [vmem:[%s298] sm:$0xff] %vm404, %v401
        %410 = vst.msk [vmem:[%s298 + $0x8] sm:$0xff] %vm404, %v402
        %411 = vst.msk [vmem:[%s298 + $0x10] sm:$0x1] %vm407, %v403
        %415 = vrot.lane.b32.xlu0 %v398, 105
        %v416 = vpop.permute.xlu0 %415
        %417 = vrot.lane.b32.xlu0 %v399, 105
        %v418 = vpop.permute.xlu0 %417
        %419 = vrot.lane.b32.xlu0 %v400, 105
        %v420 = vpop.permute.xlu0 %419
        %s424 = scalar_lea.vmem %s298, 96
        %425 = vst.msk [vmem:[%s424] sm:$0xff] %vm404, %v416
        %426 = vst.msk [vmem:[%s424 + $0x8] sm:$0xff] %vm404, %v418
        %427 = vst.msk [vmem:[%s424 + $0x10] sm:$0x1] %vm407, %v420
        %431 = vrot.lane.b32.xlu0 %v401, 105
        %v432 = vpop.permute.xlu0 %431
        %433 = vrot.lane.b32.xlu0 %v402, 105
        %v434 = vpop.permute.xlu0 %433
        %435 = vrot.lane.b32.xlu0 %v403, 105
        %v436 = vpop.permute.xlu0 %435
        %s440 = scalar_lea.vmem %s298, 192
        %441 = vst.msk [vmem:[%s440] sm:$0xff] %vm404, %v432
        %442 = vst.msk [vmem:[%s440 + $0x8] sm:$0xff] %vm404, %v434
        %443 = vst.msk [vmem:[%s440 + $0x10] sm:$0x1] %vm407, %v436
        %v444 = vand.u32 2147483647, %v343
        %v445 = vand.u32 2147483647, %v344
        %v446 = vand.u32 2147483647, %v401
        %v447 = vand.u32 2147483647, %v402
        %v448 = vand.u32 2147483647, %v403
        %vm449 = vcmask 375808
        %v450 = vsel %vm449, %v343, 0.0
        %v451 = vsel %vm449, %v344, 0.0
        %v452 = vadd.f32 %v450, %v451
        %v453 = vrot.slane %v452, 4
        %v454 = vadd.f32 %v452, %v453
        %v455 = vrot.slane %v454, 2
        %v456 = vadd.f32 %v454, %v455
        %v457 = vrot.slane %v456, 1
        %v458 = vadd.f32 %v456, %v457
        %v459 = vadd.f32 %v458, 0.0
        %vm460 = vcmp.lt.f32.partialorder %v444, 1.0
        %vm461 = vcmp.lt.f32.partialorder %v445, 1.0
        %v462 = vmul.f32 %v343, 0.5
        %v463 = vmul.f32 %v344, 0.5
        %v464 = vmul.f32 %v462, %v343
        %v465 = vmul.f32 %v463, %v344
        %v466 = vsub.f32 %v444, 0.5
        %v467 = vsub.f32 %v445, 0.5
        %v468 = vsel %vm460, %v464, %v466
        %v469 = vsel %vm461, %v465, %v467
        %v470 = vsel %vm449, %v468, 0.0
        %v471 = vsel %vm449, %v469, 0.0
        %v472 = vadd.f32 %v470, %v471
        %v473 = vrot.slane %v472, 4
        %v474 = vadd.f32 %v472, %v473
        %v475 = vrot.slane %v474, 2
        %v476 = vadd.f32 %v474, %v475
        %v477 = vrot.slane %v476, 1
        %v478 = vadd.f32 %v476, %v477
        %v479 = vadd.f32 %v478, 0.0
        %v480 = vsel %vm449, %v398, 0.0
        %v481 = vsel %vm449, %v399, 0.0
        %v482 = vadd.f32 %v480, %v481
        %vm483 = vcmask 368640
        %v484 = vsel %vm483, %v400, 0.0
        %v485 = vadd.f32 %v482, %v484
        %v486 = vrot.slane %v485, 4
        %v487 = vadd.f32 %v485, %v486
        %v488 = vrot.slane %v487, 2
        %v489 = vadd.f32 %v487, %v488
        %v490 = vrot.slane %v489, 1
        %v491 = vadd.f32 %v489, %v490
        %v492 = vadd.f32 %v491, 0.0
        %vm493 = vcmp.lt.f32.partialorder %v446, 1.0
        %vm494 = vcmp.lt.f32.partialorder %v447, 1.0
        %vm495 = vcmp.lt.f32.partialorder %v448, 1.0
        %v496 = vmul.f32 %v401, 0.5
        %v497 = vmul.f32 %v402, 0.5
        %v498 = vmul.f32 %v403, 0.5
        %v499 = vmul.f32 %v496, %v401
        %v500 = vmul.f32 %v497, %v402
        %v501 = vmul.f32 %v498, %v403
        %v502 = vsub.f32 %v446, 0.5
        %v503 = vsub.f32 %v447, 0.5
        %v504 = vsub.f32 %v448, 0.5
        %v505 = vsel %vm493, %v499, %v502
        %v506 = vsel %vm494, %v500, %v503
        %v507 = vsel %vm495, %v501, %v504
        %v508 = vsel %vm449, %v505, 0.0
        %v509 = vsel %vm449, %v506, 0.0
        %v510 = vadd.f32 %v508, %v509
        %v511 = vsel %vm483, %v507, 0.0
        %v512 = vadd.f32 %v510, %v511
        %v513 = vrot.slane %v512, 4
        %v514 = vadd.f32 %v512, %v513
        %v515 = vrot.slane %v514, 2
        %v516 = vadd.f32 %v514, %v515
        %v517 = vrot.slane %v516, 1
        %v518 = vadd.f32 %v516, %v517
        %v519 = vadd.f32 %v518, 0.0
        %s520 = scalar_lea.vmem %s242, 16 [#allocation2]
        %v521 = vld [vmem:[%s520] sm:$0xff]
        %v522 = vld [vmem:[%s520 + $0x8] sm:$0xff]
        %v524 = vsel %vm313, %v521, 0
        %v527 = vsel %vm313, %v522, 0
        %529 = vmatpush.msra.mxu0 0.0
        %530 = vmatpush.msra.mxu0 0.0
        %531 = vmatpush.msra.mxu0 0.0
        %532 = vmatpush.msra.mxu0 0.0
        %533 = vmatpush.msra.mxu0 0.0
        %534 = vmatpush.msra.mxu0 0.0
        %535 = vmatpush.msra.mxu0 0.0
        %536 = vmatpush.msra.mxu0 0.0
        %537 = vmatpush.msra.mxu0 0.0
        %538 = vmatpush.msra.mxu0 0.0
        %539 = vmatpush.msra.mxu0 0.0
        %540 = vmatpush.msra.mxu0 0.0
        %541 = vmatpush.msra.mxu0 0.0
        %542 = vmatpush.msra.mxu0 0.0
        %543 = vmatpush.msra.mxu0 %v304
        %544 = vmatpush.msra.mxu0 %v303
        %545 = vmatmul.f32.gmra.mxu0 %v524
        %v546 = vpop.f32.mrf.mxu0
        %v547 = vadd.f32 0.0, %v546
        %548 = vmatmul.f32.gmra.mxu0 %v527
        %v549 = vpop.f32.mrf.mxu0
        %v550 = vadd.f32 0.0, %v549
        %551 = vdwg.mxu0
        %v552 = vtanh.pop %v547
        %v553 = vtanh.pop %v550
        %554 = vmatpush.msra.mxu0 0.0
        %555 = vmatpush.msra.mxu0 0.0
        %556 = vmatpush.msra.mxu0 0.0
        %557 = vmatpush.msra.mxu0 0.0
        %558 = vmatpush.msra.mxu0 0.0
        %559 = vmatpush.msra.mxu0 0.0
        %560 = vmatpush.msra.mxu0 0.0
        %561 = vmatpush.msra.mxu0 0.0
        %562 = vmatpush.msra.mxu0 0.0
        %563 = vmatpush.msra.mxu0 0.0
        %564 = vmatpush.msra.mxu0 0.0
        %565 = vmatpush.msra.mxu0 0.0
        %566 = vmatpush.msra.mxu0 0.0
        %567 = vmatpush.msra.mxu0 0.0
        %568 = vmatpush.msra.mxu0 %v553
        %569 = vmatpush.msra.mxu0 %v552
        %570 = vmatmul.f32.gmra.mxu0 %v346
        %v571 = vpop.f32.mrf.mxu0
        %v572 = vadd.f32 0.0, %v571
        %573 = vmatmul.f32.gmra.mxu0 %v349
        %v574 = vpop.f32.mrf.mxu0
        %v575 = vadd.f32 0.0, %v574
        %576 = vmatmul.f32.gmra.mxu0 %v352
        %v577 = vpop.f32.mrf.mxu0
        %v578 = vadd.f32 0.0, %v577
        %579 = vmatmul.f32.gmra.mxu0 %v355
        %v580 = vpop.f32.mrf.mxu0
        %v581 = vadd.f32 0.0, %v580
        %582 = vmatmul.f32.gmra.mxu0 %v358
        %v583 = vpop.f32.mrf.mxu0
        %v584 = vadd.f32 0.0, %v583
        %585 = vmatmul.f32.gmra.mxu0 %v361
        %v586 = vpop.f32.mrf.mxu0
        %v587 = vadd.f32 0.0, %v586
        %588 = vdwg.mxu0
        %v589 = vtanh.pop %v572
        %v590 = vtanh.pop %v575
        %v591 = vtanh.pop %v578
        %v592 = vtanh.pop %v581
        %v593 = vtanh.pop %v584
        %v594 = vtanh.pop %v587
        %s595 = scalar_lea.vmem %s293, 24
        %596 = vst.msk [vmem:[%s595] sm:$0xff] %vm404, %v589
        %597 = vst.msk [vmem:[%s595 + $0x8] sm:$0xff] %vm404, %v590
        %598 = vst.msk [vmem:[%s595 + $0x10] sm:$0x1] %vm407, %v591
        %s599 = scalar_lea.vmem %s298, 24
        %600 = vst.msk [vmem:[%s599] sm:$0xff] %vm404, %v592
        %601 = vst.msk [vmem:[%s599 + $0x8] sm:$0xff] %vm404, %v593
        %602 = vst.msk [vmem:[%s599 + $0x10] sm:$0x1] %vm407, %v594
        %606 = vrot.lane.b32.xlu0 %v589, 105
        %v607 = vpop.permute.xlu0 %606
        %608 = vrot.lane.b32.xlu0 %v590, 105
        %v609 = vpop.permute.xlu0 %608
        %610 = vrot.lane.b32.xlu0 %v591, 105
        %v611 = vpop.permute.xlu0 %610
        %s615 = scalar_lea.vmem %s298, 120
        %616 = vst.msk [vmem:[%s615] sm:$0xff] %vm404, %v607
        %617 = vst.msk [vmem:[%s615 + $0x8] sm:$0xff] %vm404, %v609
        %618 = vst.msk [vmem:[%s615 + $0x10] sm:$0x1] %vm407, %v611
        %622 = vrot.lane.b32.xlu0 %v592, 105
        %v623 = vpop.permute.xlu0 %622
        %624 = vrot.lane.b32.xlu0 %v593, 105
        %v625 = vpop.permute.xlu0 %624
        %626 = vrot.lane.b32.xlu0 %v594, 105
        %v627 = vpop.permute.xlu0 %626
        %s631 = scalar_lea.vmem %s298, 216
        %632 = vst.msk [vmem:[%s631] sm:$0xff] %vm404, %v623
        %633 = vst.msk [vmem:[%s631 + $0x8] sm:$0xff] %vm404, %v625
        %634 = vst.msk [vmem:[%s631 + $0x10] sm:$0x1] %vm407, %v627
        %v635 = vand.u32 2147483647, %v552
        %v636 = vand.u32 2147483647, %v553
        %v637 = vand.u32 2147483647, %v592
        %v638 = vand.u32 2147483647, %v593
        %v639 = vand.u32 2147483647, %v594
        %v640 = vsel %vm449, %v552, 0.0
        %v641 = vsel %vm449, %v553, 0.0
        %v642 = vadd.f32 %v640, %v641
        %v643 = vrot.slane %v642, 4
        %v644 = vadd.f32 %v642, %v643
        %v645 = vrot.slane %v644, 2
        %v646 = vadd.f32 %v644, %v645
        %v647 = vrot.slane %v646, 1
        %v648 = vadd.f32 %v646, %v647
        %v649 = vadd.f32 %v459, %v648
        %vm650 = vcmp.lt.f32.partialorder %v635, 1.0
        %vm651 = vcmp.lt.f32.partialorder %v636, 1.0
        %v652 = vmul.f32 %v552, 0.5
        %v653 = vmul.f32 %v553, 0.5
        %v654 = vmul.f32 %v652, %v552
        %v655 = vmul.f32 %v653, %v553
        %v656 = vsub.f32 %v635, 0.5
        %v657 = vsub.f32 %v636, 0.5
        %v658 = vsel %vm650, %v654, %v656
        %v659 = vsel %vm651, %v655, %v657
        %v660 = vsel %vm449, %v658, 0.0
        %v661 = vsel %vm449, %v659, 0.0
        %v662 = vadd.f32 %v660, %v661
        %v663 = vrot.slane %v662, 4
        %v664 = vadd.f32 %v662, %v663
        %v665 = vrot.slane %v664, 2
        %v666 = vadd.f32 %v664, %v665
        %v667 = vrot.slane %v666, 1
        %v668 = vadd.f32 %v666, %v667
        %v669 = vadd.f32 %v479, %v668
        %v670 = vsel %vm449, %v589, 0.0
        %v671 = vsel %vm449, %v590, 0.0
        %v672 = vadd.f32 %v670, %v671
        %v673 = vsel %vm483, %v591, 0.0
        %v674 = vadd.f32 %v672, %v673
        %v675 = vrot.slane %v674, 4
        %v676 = vadd.f32 %v674, %v675
        %v677 = vrot.slane %v676, 2
        %v678 = vadd.f32 %v676, %v677
        %v679 = vrot.slane %v678, 1
        %v680 = vadd.f32 %v678, %v679
        %v681 = vadd.f32 %v492, %v680
        %vm682 = vcmp.lt.f32.partialorder %v637, 1.0
        %vm683 = vcmp.lt.f32.partialorder %v638, 1.0
        %vm684 = vcmp.lt.f32.partialorder %v639, 1.0
        %v685 = vmul.f32 %v592, 0.5
        %v686 = vmul.f32 %v593, 0.5
        %v687 = vmul.f32 %v594, 0.5
        %v688 = vmul.f32 %v685, %v592
        %v689 = vmul.f32 %v686, %v593
        %v690 = vmul.f32 %v687, %v594
        %v691 = vsub.f32 %v637, 0.5
        %v692 = vsub.f32 %v638, 0.5
        %v693 = vsub.f32 %v639, 0.5
        %v694 = vsel %vm682, %v688, %v691
        %v695 = vsel %vm683, %v689, %v692
        %v696 = vsel %vm684, %v690, %v693
        %v697 = vsel %vm449, %v694, 0.0
        %v698 = vsel %vm449, %v695, 0.0
        %v699 = vadd.f32 %v697, %v698
        %v700 = vsel %vm483, %v696, 0.0
        %v701 = vadd.f32 %v699, %v700
        %v702 = vrot.slane %v701, 4
        %v703 = vadd.f32 %v701, %v702
        %v704 = vrot.slane %v703, 2
        %v705 = vadd.f32 %v703, %v704
        %v706 = vrot.slane %v705, 1
        %v707 = vadd.f32 %v705, %v706
        %v708 = vadd.f32 %v519, %v707
        %s709 = scalar_lea.vmem %s242, 32 [#allocation2]
        %v710 = vld [vmem:[%s709] sm:$0xff]
        %v711 = vld [vmem:[%s709 + $0x8] sm:$0xff]
        %v713 = vsel %vm313, %v710, 0
        %v716 = vsel %vm313, %v711, 0
        %718 = vmatpush.msra.mxu0 0.0
        %719 = vmatpush.msra.mxu0 0.0
        %720 = vmatpush.msra.mxu0 0.0
        %721 = vmatpush.msra.mxu0 0.0
        %722 = vmatpush.msra.mxu0 0.0
        %723 = vmatpush.msra.mxu0 0.0
        %724 = vmatpush.msra.mxu0 0.0
        %725 = vmatpush.msra.mxu0 0.0
        %726 = vmatpush.msra.mxu0 0.0
        %727 = vmatpush.msra.mxu0 0.0
        %728 = vmatpush.msra.mxu0 0.0
        %729 = vmatpush.msra.mxu0 0.0
        %730 = vmatpush.msra.mxu0 0.0
        %731 = vmatpush.msra.mxu0 0.0
        %732 = vmatpush.msra.mxu0 %v304
        %733 = vmatpush.msra.mxu0 %v303
        %734 = vmatmul.f32.gmra.mxu0 %v713
        %v735 = vpop.f32.mrf.mxu0
        %v736 = vadd.f32 0.0, %v735
        %737 = vmatmul.f32.gmra.mxu0 %v716
        %v738 = vpop.f32.mrf.mxu0
        %v739 = vadd.f32 0.0, %v738
        %740 = vdwg.mxu0
        %v741 = vtanh.pop %v736
        %v742 = vtanh.pop %v739
        %743 = vmatpush.msra.mxu0 0.0
        %744 = vmatpush.msra.mxu0 0.0
        %745 = vmatpush.msra.mxu0 0.0
        %746 = vmatpush.msra.mxu0 0.0
        %747 = vmatpush.msra.mxu0 0.0
        %748 = vmatpush.msra.mxu0 0.0
        %749 = vmatpush.msra.mxu0 0.0
        %750 = vmatpush.msra.mxu0 0.0
        %751 = vmatpush.msra.mxu0 0.0
        %752 = vmatpush.msra.mxu0 0.0
        %753 = vmatpush.msra.mxu0 0.0
        %754 = vmatpush.msra.mxu0 0.0
        %755 = vmatpush.msra.mxu0 0.0
        %756 = vmatpush.msra.mxu0 0.0
        %757 = vmatpush.msra.mxu0 %v742
        %758 = vmatpush.msra.mxu0 %v741
        %759 = vmatmul.f32.gmra.mxu0 %v346
        %v760 = vpop.f32.mrf.mxu0
        %v761 = vadd.f32 0.0, %v760
        %762 = vmatmul.f32.gmra.mxu0 %v349
        %v763 = vpop.f32.mrf.mxu0
        %v764 = vadd.f32 0.0, %v763
        %765 = vmatmul.f32.gmra.mxu0 %v352
        %v766 = vpop.f32.mrf.mxu0
        %v767 = vadd.f32 0.0, %v766
        %768 = vmatmul.f32.gmra.mxu0 %v355
        %v769 = vpop.f32.mrf.mxu0
        %v770 = vadd.f32 0.0, %v769
        %771 = vmatmul.f32.gmra.mxu0 %v358
        %v772 = vpop.f32.mrf.mxu0
        %v773 = vadd.f32 0.0, %v772
        %774 = vmatmul.f32.gmra.mxu0 %v361
        %v775 = vpop.f32.mrf.mxu0
        %v776 = vadd.f32 0.0, %v775
        %777 = vdwg.mxu0
        %v778 = vtanh.pop %v761
        %v779 = vtanh.pop %v764
        %v780 = vtanh.pop %v767
        %v781 = vtanh.pop %v770
        %v782 = vtanh.pop %v773
        %v783 = vtanh.pop %v776
        %s784 = scalar_lea.vmem %s293, 48
        %785 = vst.msk [vmem:[%s784] sm:$0xff] %vm404, %v778
        %786 = vst.msk [vmem:[%s784 + $0x8] sm:$0xff] %vm404, %v779
        %787 = vst.msk [vmem:[%s784 + $0x10] sm:$0x1] %vm407, %v780
        %s788 = scalar_lea.vmem %s298, 48
        %789 = vst.msk [vmem:[%s788] sm:$0xff] %vm404, %v781
        %790 = vst.msk [vmem:[%s788 + $0x8] sm:$0xff] %vm404, %v782
        %791 = vst.msk [vmem:[%s788 + $0x10] sm:$0x1] %vm407, %v783
        %795 = vrot.lane.b32.xlu0 %v778, 105
        %v796 = vpop.permute.xlu0 %795
        %797 = vrot.lane.b32.xlu0 %v779, 105
        %v798 = vpop.permute.xlu0 %797
        %799 = vrot.lane.b32.xlu0 %v780, 105
        %v800 = vpop.permute.xlu0 %799
        %s804 = scalar_lea.vmem %s298, 144
        %805 = vst.msk [vmem:[%s804] sm:$0xff] %vm404, %v796
        %806 = vst.msk [vmem:[%s804 + $0x8] sm:$0xff] %vm404, %v798
        %807 = vst.msk [vmem:[%s804 + $0x10] sm:$0x1] %vm407, %v800
        %811 = vrot.lane.b32.xlu0 %v781, 105
        %v812 = vpop.permute.xlu0 %811
        %813 = vrot.lane.b32.xlu0 %v782, 105
        %v814 = vpop.permute.xlu0 %813
        %815 = vrot.lane.b32.xlu0 %v783, 105
        %v816 = vpop.permute.xlu0 %815
        %s820 = scalar_lea.vmem %s298, 240
        %821 = vst.msk [vmem:[%s820] sm:$0xff] %vm404, %v812
        %822 = vst.msk [vmem:[%s820 + $0x8] sm:$0xff] %vm404, %v814
        %823 = vst.msk [vmem:[%s820 + $0x10] sm:$0x1] %vm407, %v816
        %v824 = vand.u32 2147483647, %v741
        %v825 = vand.u32 2147483647, %v742
        %v826 = vand.u32 2147483647, %v781
        %v827 = vand.u32 2147483647, %v782
        %v828 = vand.u32 2147483647, %v783
        %v829 = vsel %vm449, %v741, 0.0
        %v830 = vsel %vm449, %v742, 0.0
        %v831 = vadd.f32 %v829, %v830
        %v832 = vrot.slane %v831, 4
        %v833 = vadd.f32 %v831, %v832
        %v834 = vrot.slane %v833, 2
        %v835 = vadd.f32 %v833, %v834
        %v836 = vrot.slane %v835, 1
        %v837 = vadd.f32 %v835, %v836
        %v838 = vadd.f32 %v649, %v837
        %vm839 = vcmp.lt.f32.partialorder %v824, 1.0
        %vm840 = vcmp.lt.f32.partialorder %v825, 1.0
        %v841 = vmul.f32 %v741, 0.5
        %v842 = vmul.f32 %v742, 0.5
        %v843 = vmul.f32 %v841, %v741
        %v844 = vmul.f32 %v842, %v742
        %v845 = vsub.f32 %v824, 0.5
        %v846 = vsub.f32 %v825, 0.5
        %v847 = vsel %vm839, %v843, %v845
        %v848 = vsel %vm840, %v844, %v846
        %v849 = vsel %vm449, %v847, 0.0
        %v850 = vsel %vm449, %v848, 0.0
        %v851 = vadd.f32 %v849, %v850
        %v852 = vrot.slane %v851, 4
        %v853 = vadd.f32 %v851, %v852
        %v854 = vrot.slane %v853, 2
        %v855 = vadd.f32 %v853, %v854
        %v856 = vrot.slane %v855, 1
        %v857 = vadd.f32 %v855, %v856
        %v858 = vadd.f32 %v669, %v857
        %v859 = vsel %vm449, %v778, 0.0
        %v860 = vsel %vm449, %v779, 0.0
        %v861 = vadd.f32 %v859, %v860
        %v862 = vsel %vm483, %v780, 0.0
        %v863 = vadd.f32 %v861, %v862
        %v864 = vrot.slane %v863, 4
        %v865 = vadd.f32 %v863, %v864
        %v866 = vrot.slane %v865, 2
        %v867 = vadd.f32 %v865, %v866
        %v868 = vrot.slane %v867, 1
        %v869 = vadd.f32 %v867, %v868
        %v870 = vadd.f32 %v681, %v869
        %vm871 = vcmp.lt.f32.partialorder %v826, 1.0
        %vm872 = vcmp.lt.f32.partialorder %v827, 1.0
        %vm873 = vcmp.lt.f32.partialorder %v828, 1.0
        %v874 = vmul.f32 %v781, 0.5
        %v875 = vmul.f32 %v782, 0.5
        %v876 = vmul.f32 %v783, 0.5
        %v877 = vmul.f32 %v874, %v781
        %v878 = vmul.f32 %v875, %v782
        %v879 = vmul.f32 %v876, %v783
        %v880 = vsub.f32 %v826, 0.5
        %v881 = vsub.f32 %v827, 0.5
        %v882 = vsub.f32 %v828, 0.5
        %v883 = vsel %vm871, %v877, %v880
        %v884 = vsel %vm872, %v878, %v881
        %v885 = vsel %vm873, %v879, %v882
        %v886 = vsel %vm449, %v883, 0.0
        %v887 = vsel %vm449, %v884, 0.0
        %v888 = vadd.f32 %v886, %v887
        %v889 = vsel %vm483, %v885, 0.0
        %v890 = vadd.f32 %v888, %v889
        %v891 = vrot.slane %v890, 4
        %v892 = vadd.f32 %v890, %v891
        %v893 = vrot.slane %v892, 2
        %v894 = vadd.f32 %v892, %v893
        %v895 = vrot.slane %v894, 1
        %v896 = vadd.f32 %v894, %v895
        %v897 = vadd.f32 %v708, %v896
        %s898 = scalar_lea.vmem %s242, 48 [#allocation2]
        %v899 = vld [vmem:[%s898] sm:$0xff]
        %v900 = vld [vmem:[%s898 + $0x8] sm:$0xff]
        %v902 = vsel %vm313, %v899, 0
        %v905 = vsel %vm313, %v900, 0
        %907 = vmatpush.msra.mxu0 0.0
        %908 = vmatpush.msra.mxu0 0.0
        %909 = vmatpush.msra.mxu0 0.0
        %910 = vmatpush.msra.mxu0 0.0
        %911 = vmatpush.msra.mxu0 0.0
        %912 = vmatpush.msra.mxu0 0.0
        %913 = vmatpush.msra.mxu0 0.0
        %914 = vmatpush.msra.mxu0 0.0
        %915 = vmatpush.msra.mxu0 0.0
        %916 = vmatpush.msra.mxu0 0.0
        %917 = vmatpush.msra.mxu0 0.0
        %918 = vmatpush.msra.mxu0 0.0
        %919 = vmatpush.msra.mxu0 0.0
        %920 = vmatpush.msra.mxu0 0.0
        %921 = vmatpush.msra.mxu0 %v304
        %922 = vmatpush.msra.mxu0 %v303
        %923 = vmatmul.f32.gmra.mxu0 %v902
        %v924 = vpop.f32.mrf.mxu0
        %v925 = vadd.f32 0.0, %v924
        %926 = vmatmul.f32.gmra.mxu0 %v905
        %v927 = vpop.f32.mrf.mxu0
        %v928 = vadd.f32 0.0, %v927
        %929 = vdwg.mxu0
        %v930 = vtanh.pop %v925
        %v931 = vtanh.pop %v928
        %932 = vmatpush.msra.mxu0 0.0
        %933 = vmatpush.msra.mxu0 0.0
        %934 = vmatpush.msra.mxu0 0.0
        %935 = vmatpush.msra.mxu0 0.0
        %936 = vmatpush.msra.mxu0 0.0
        %937 = vmatpush.msra.mxu0 0.0
        %938 = vmatpush.msra.mxu0 0.0
        %939 = vmatpush.msra.mxu0 0.0
        %940 = vmatpush.msra.mxu0 0.0
        %941 = vmatpush.msra.mxu0 0.0
        %942 = vmatpush.msra.mxu0 0.0
        %943 = vmatpush.msra.mxu0 0.0
        %944 = vmatpush.msra.mxu0 0.0
        %945 = vmatpush.msra.mxu0 0.0
        %946 = vmatpush.msra.mxu0 %v931
        %947 = vmatpush.msra.mxu0 %v930
        %948 = vmatmul.f32.gmra.mxu0 %v346
        %v949 = vpop.f32.mrf.mxu0
        %v950 = vadd.f32 0.0, %v949
        %951 = vmatmul.f32.gmra.mxu0 %v349
        %v952 = vpop.f32.mrf.mxu0
        %v953 = vadd.f32 0.0, %v952
        %954 = vmatmul.f32.gmra.mxu0 %v352
        %v955 = vpop.f32.mrf.mxu0
        %v956 = vadd.f32 0.0, %v955
        %957 = vmatmul.f32.gmra.mxu0 %v355
        %v958 = vpop.f32.mrf.mxu0
        %v959 = vadd.f32 0.0, %v958
        %960 = vmatmul.f32.gmra.mxu0 %v358
        %v961 = vpop.f32.mrf.mxu0
        %v962 = vadd.f32 0.0, %v961
        %963 = vmatmul.f32.gmra.mxu0 %v361
        %v964 = vpop.f32.mrf.mxu0
        %v965 = vadd.f32 0.0, %v964
        %966 = vdwg.mxu0
        %v967 = vtanh.pop %v950
        %v968 = vtanh.pop %v953
        %v969 = vtanh.pop %v956
        %v970 = vtanh.pop %v959
        %v971 = vtanh.pop %v962
        %v972 = vtanh.pop %v965
        %s973 = scalar_lea.vmem %s293, 72
        %974 = vst.msk [vmem:[%s973] sm:$0xff] %vm404, %v967
        %975 = vst.msk [vmem:[%s973 + $0x8] sm:$0xff] %vm404, %v968
        %976 = vst.msk [vmem:[%s973 + $0x10] sm:$0x1] %vm407, %v969
        %s977 = scalar_lea.vmem %s298, 72
        %978 = vst.msk [vmem:[%s977] sm:$0xff] %vm404, %v970
        %979 = vst.msk [vmem:[%s977 + $0x8] sm:$0xff] %vm404, %v971
        %980 = vst.msk [vmem:[%s977 + $0x10] sm:$0x1] %vm407, %v972
        %984 = vrot.lane.b32.xlu0 %v967, 105
        %v985 = vpop.permute.xlu0 %984
        %986 = vrot.lane.b32.xlu0 %v968, 105
        %v987 = vpop.permute.xlu0 %986
        %988 = vrot.lane.b32.xlu0 %v969, 105
        %v989 = vpop.permute.xlu0 %988
        %s993 = scalar_lea.vmem %s298, 168
        %994 = vst.msk [vmem:[%s993] sm:$0xff] %vm404, %v985
        %995 = vst.msk [vmem:[%s993 + $0x8] sm:$0xff] %vm404, %v987
        %996 = vst.msk [vmem:[%s993 + $0x10] sm:$0x1] %vm407, %v989
        %1000 = vrot.lane.b32.xlu0 %v970, 105
        %v1001 = vpop.permute.xlu0 %1000
        %1002 = vrot.lane.b32.xlu0 %v971, 105
        %v1003 = vpop.permute.xlu0 %1002
        %1004 = vrot.lane.b32.xlu0 %v972, 105
        %v1005 = vpop.permute.xlu0 %1004
        %s1009 = scalar_lea.vmem %s298, 264
        %1010 = vst.msk [vmem:[%s1009] sm:$0xff] %vm404, %v1001
        %1011 = vst.msk [vmem:[%s1009 + $0x8] sm:$0xff] %vm404, %v1003
        %1012 = vst.msk [vmem:[%s1009 + $0x10] sm:$0x1] %vm407, %v1005
        %v1013 = vand.u32 2147483647, %v930
        %v1014 = vand.u32 2147483647, %v931
        %v1015 = vand.u32 2147483647, %v970
        %v1016 = vand.u32 2147483647, %v971
        %v1017 = vand.u32 2147483647, %v972
        %v1018 = vsel %vm449, %v930, 0.0
        %v1019 = vsel %vm449, %v931, 0.0
        %v1020 = vadd.f32 %v1018, %v1019
        %v1021 = vrot.slane %v1020, 4
        %v1022 = vadd.f32 %v1020, %v1021
        %v1023 = vrot.slane %v1022, 2
        %v1024 = vadd.f32 %v1022, %v1023
        %v1025 = vrot.slane %v1024, 1
        %v1026 = vadd.f32 %v1024, %v1025
        %v1027 = vadd.f32 %v838, %v1026
        %vm1028 = vcmp.lt.f32.partialorder %v1013, 1.0
        %vm1029 = vcmp.lt.f32.partialorder %v1014, 1.0
        %v1030 = vmul.f32 %v930, 0.5
        %v1031 = vmul.f32 %v931, 0.5
        %v1032 = vmul.f32 %v1030, %v930
        %v1033 = vmul.f32 %v1031, %v931
        %v1034 = vsub.f32 %v1013, 0.5
        %v1035 = vsub.f32 %v1014, 0.5
        %v1036 = vsel %vm1028, %v1032, %v1034
        %v1037 = vsel %vm1029, %v1033, %v1035
        %v1038 = vsel %vm449, %v1036, 0.0
        %v1039 = vsel %vm449, %v1037, 0.0
        %v1040 = vadd.f32 %v1038, %v1039
        %v1041 = vrot.slane %v1040, 4
        %v1042 = vadd.f32 %v1040, %v1041
        %v1043 = vrot.slane %v1042, 2
        %v1044 = vadd.f32 %v1042, %v1043
        %v1045 = vrot.slane %v1044, 1
        %v1046 = vadd.f32 %v1044, %v1045
        %v1047 = vadd.f32 %v858, %v1046
        %v1048 = vsel %vm449, %v967, 0.0
        %v1049 = vsel %vm449, %v968, 0.0
        %v1050 = vadd.f32 %v1048, %v1049
        %v1051 = vsel %vm483, %v969, 0.0
        %v1052 = vadd.f32 %v1050, %v1051
        %v1053 = vrot.slane %v1052, 4
        %v1054 = vadd.f32 %v1052, %v1053
        %v1055 = vrot.slane %v1054, 2
        %v1056 = vadd.f32 %v1054, %v1055
        %v1057 = vrot.slane %v1056, 1
        %v1058 = vadd.f32 %v1056, %v1057
        %v1059 = vadd.f32 %v870, %v1058
        %vm1060 = vcmp.lt.f32.partialorder %v1015, 1.0
        %vm1061 = vcmp.lt.f32.partialorder %v1016, 1.0
        %vm1062 = vcmp.lt.f32.partialorder %v1017, 1.0
        %v1063 = vmul.f32 %v970, 0.5
        %v1064 = vmul.f32 %v971, 0.5
        %v1065 = vmul.f32 %v972, 0.5
        %v1066 = vmul.f32 %v1063, %v970
        %v1067 = vmul.f32 %v1064, %v971
        %v1068 = vmul.f32 %v1065, %v972
        %v1069 = vsub.f32 %v1015, 0.5
        %v1070 = vsub.f32 %v1016, 0.5
        %v1071 = vsub.f32 %v1017, 0.5
        %v1072 = vsel %vm1060, %v1066, %v1069
        %v1073 = vsel %vm1061, %v1067, %v1070
        %v1074 = vsel %vm1062, %v1068, %v1071
        %v1075 = vsel %vm449, %v1072, 0.0
        %v1076 = vsel %vm449, %v1073, 0.0
        %v1077 = vadd.f32 %v1075, %v1076
        %v1078 = vsel %vm483, %v1074, 0.0
        %v1079 = vadd.f32 %v1077, %v1078
        %v1080 = vrot.slane %v1079, 4
        %v1081 = vadd.f32 %v1079, %v1080
        %v1082 = vrot.slane %v1081, 2
        %v1083 = vadd.f32 %v1081, %v1082
        %v1084 = vrot.slane %v1083, 1
        %v1085 = vadd.f32 %v1083, %v1084
        %v1086 = vadd.f32 %v897, %v1085
        %vm1087 = vcmask 1040384
        %v1088 = vsel %vm1087, %v1027, %v1047
        %vm1089 = vcmask 1041408
        %v1090 = vsel %vm1089, %v1088, %v1059
        %vm1091 = vcmask 1042432
        %v1092 = vsel %vm1091, %v1090, %v1086
        %vm1093 = vcmask 371712
        %1094 = vst.msk [vmem:[%s302] sm:$0xf] %vm1093, %v1092
        %p1095 = scmp.lt.s32.totalorder %s21, 1
        %s1096 = scalar_select %p1095, %s21, 1
        %s1097 = smul.addr %s1096, 12
        %s1098 = smul.addr %s1097, 8
        %s1099 = scalar_lea.vmem %s3, %s1098
        %p1100 = scmp.lt.s32.totalorder %s21, 1
        %s1101 = scalar_select %p1100, %s21, 1
        %s1102 = smul.addr %s1101, 36
        %s1103 = smul.addr %s1102, 8
        %s1104 = scalar_lea.vmem %s4, %s1103
        %p1105 = scmp.lt.s32.totalorder %s21, 1
        %s1106 = scalar_select %p1105, %s21, 1
        %s1107 = smul.addr %s1106, 4
        %s1108 = scalar_lea.vmem %s5, %s1107
        // Predicated region
        $region45: #{level_wn_blocks_forward.1} parent=31 // pred_check
          %p1109 = pneg %p107
        $region46: #{level_wn_blocks_forward.1} parent=31 // pred_check_branch
          %1111 = sbr.rel (%p1109) target = $region48
        $region47: #{level_wn_blocks_forward.1} parent=31 // pred_region
          _
        $region48: #{level_wn_blocks_forward.1} parent=31 // pred_fallthru
          _
        // Predicated region
        $region49: #{level_wn_blocks_forward.1} parent=31 // pred_check
          %p1112 = pneg %p133
        $region50: #{level_wn_blocks_forward.1} parent=31 // pred_check_branch
          %1114 = sbr.rel (%p1112) target = $region52
        $region51: #{level_wn_blocks_forward.1} parent=31 // pred_region
          _
        $region52: #{level_wn_blocks_forward.1} parent=31 // pred_fallthru
          _
        // Predicated region
        $region53: #{level_wn_blocks_forward.1} parent=31 // pred_check
          %p1115 = pneg %p159
        $region54: #{level_wn_blocks_forward.1} parent=31 // pred_check_branch
          %1117 = sbr.rel (%p1115) target = $region56
        $region55: #{level_wn_blocks_forward.1} parent=31 // pred_region
          _
        $region56: #{level_wn_blocks_forward.1} parent=31 // pred_fallthru
          _
      $region32: #{level_wn_blocks_forward.1} parent=5 // pred_fallthru
        _
      %p1118 = scmp.le.s32.totalorder 2, %s16
      // Predicated region
      $region57: #{level_wn_blocks_forward.1} parent=5 // pred_check
        %p1119 = pneg %p1118
      $region58: #{level_wn_blocks_forward.1} parent=5 // pred_check_branch
        %1121 = sbr.rel (%p1119) target = $region60
      $region59: #{level_wn_blocks_forward.1} parent=5 // pred_region
        %s1122 = ssub.s32 %s16, 2
        // Predicated region
        $region61: #{level_wn_blocks_forward.1} parent=59 // pred_check
          %p1123 = pneg %p113
        $region62: #{level_wn_blocks_forward.1} parent=59 // pred_check_branch
          %1125 = sbr.rel (%p1123) target = $region64
        $region63: #{level_wn_blocks_forward.1} parent=59 // pred_region
          %p1126 = scmp.lt.s32.totalorder %s22, 1
          %s1127 = scalar_select %p1126, %s22, 1
          %s1128 = smul.addr %s1127, 12
          %s1129 = smul.addr %s1128, 8
          %s1130 = scalar_lea.vmem %s3, %s1129
        $region64: #{level_wn_blocks_forward.1} parent=59 // pred_fallthru
          _
        // Predicated region
        $region65: #{level_wn_blocks_forward.1} parent=59 // pred_check
          %p1131 = pneg %p139
        $region66: #{level_wn_blocks_forward.1} parent=59 // pred_check_branch
          %1133 = sbr.rel (%p1131) target = $region68
        $region67: #{level_wn_blocks_forward.1} parent=59 // pred_region
          %p1134 = scmp.lt.s32.totalorder %s22, 1
          %s1135 = scalar_select %p1134, %s22, 1
          %s1136 = smul.addr %s1135, 36
          %s1137 = smul.addr %s1136, 8
          %s1138 = scalar_lea.vmem %s4, %s1137
        $region68: #{level_wn_blocks_forward.1} parent=59 // pred_fallthru
          _
        // Predicated region
        $region69: #{level_wn_blocks_forward.1} parent=59 // pred_check
          %p1139 = pneg %p165
        $region70: #{level_wn_blocks_forward.1} parent=59 // pred_check_branch
          %1141 = sbr.rel (%p1139) target = $region72
        $region71: #{level_wn_blocks_forward.1} parent=59 // pred_region
          %p1142 = scmp.lt.s32.totalorder %s22, 1
          %s1143 = scalar_select %p1142, %s22, 1
          %s1144 = smul.addr %s1143, 4
          %s1145 = scalar_lea.vmem %s5, %s1144
        $region72: #{level_wn_blocks_forward.1} parent=59 // pred_fallthru
          _
      $region60: #{level_wn_blocks_forward.1} parent=5 // pred_fallthru
        _
    $region6: #{level_wn_blocks_forward.1} parent=1 // loop_footer
      %s20 = sadd.s32 1, %s16
    $region7: #{level_wn_blocks_forward.1} parent=1 // loop_footer_branch
      %15 = sbr.rel target = $region3
    $region8: #{level_wn_blocks_forward.1} parent=1 // loop_exit
      _
    %1146 = vsyncpa [#allocation3], 1
    %s1147 = scalar_lea.sflag [#allocation3], 1
    %1148 = vsyncpa %s1147, 1
    %1149 = vsyncpa [#allocation5], 1

</llo_original>
